<compile_context>
chip_gen: v6e
topology: v6e:2x2x1
jax: 0.10.0
libtpu: 0.0.40
codegen_flags: <defaults>
</compile_context>

<pallas_src>
import numpy as np
import jax
import jax.numpy as jnp
from jax import lax
from jax.experimental import pallas as pl
from jax.experimental.pallas import tpu as pltpu


def _round_up(x, m):
    return ((x + m - 1) // m) * m


# ----------------------------------------------------------------------------
# Fused kernel: per time-chunk
#   x_chunk (T*Bp, F) --compress--> (T*Bp, Hp) --Wih_cat--> x-gates (T*Bp, 3*Hp)
#   staged in VMEM scratch, then an unrolled GRU recurrence over the T timesteps,
#   carrying h in VMEM scratch across grid steps (chunks).
# Gate lane-block order [r | z | n] (PyTorch GRU convention), each Hp lanes wide.
# ----------------------------------------------------------------------------
def encoder_gru_kernel(x_ref, wc_ref, bc_ref, wih_ref, bih_ref,
                       whh_ref, bhh_ref, out_ref, xg_scratch, h_scratch):
    Bp, Hp = h_scratch.shape
    T = x_ref.shape[0] // Bp                      # static timesteps per chunk

    @pl.when(pl.program_id(0) == 0)
    def _():
        h_scratch[...] = jnp.zeros_like(h_scratch)

    # ---- fused "compress" Linear + input-side gate projection for the whole chunk ----
    # TODO(synk): nn.Dropout(0.2) is identity in eval/inference mode, so it is omitted.
    compressed = jnp.dot(x_ref[...], wc_ref[...],
                         preferred_element_type=jnp.float32) + bc_ref[...]   # (T*Bp, Hp)
    xg_scratch[...] = jnp.dot(compressed, wih_ref[...],
                              preferred_element_type=jnp.float32) + bih_ref[...]  # (T*Bp, 3Hp)

    # ---- GRU recurrence, statically unrolled over the chunk ----
    bhh = jnp.broadcast_to(bhh_ref[...], (Bp, 3 * Hp))   # hoisted out of the loop
    h = h_scratch[...]                                    # (Bp, Hp)
    for i in range(T):
        lo = i * Bp                                       # tile-aligned (Bp % 8 == 0)
        hg = jnp.dot(h, whh_ref[...],
                     preferred_element_type=jnp.float32) + bhh        # (Bp, 3Hp)
        xg = xg_scratch[lo:lo + Bp, :]                                 # (Bp, 3Hp)
        r = jax.nn.sigmoid(xg[:, 0:Hp] + hg[:, 0:Hp])
        z = jax.nn.sigmoid(xg[:, Hp:2 * Hp] + hg[:, Hp:2 * Hp])
        n = jnp.tanh(xg[:, 2 * Hp:] + r * hg[:, 2 * Hp:])
        h = (1.0 - z) * n + z * h
        out_ref[lo:lo + Bp, :] = h.astype(out_ref.dtype)               # full-tile store
    h_scratch[...] = h


# ----------------------------------------------------------------------------
# Wrapper
# ----------------------------------------------------------------------------
def encoder_rnn_forward(x, params):
    """x: (B, S, F) float32 -> (output (B, S, H), hidden (1, B, H))"""
    B, S, F = x.shape
    H = params["wc"].shape[0]
    LANE, SUB = 128, 8

    Hp = _round_up(H, LANE)                 # lane-dense hidden size
    Bp = _round_up(B, SUB)                  # sublane-dense batch

    # Largest time-chunk <= 32 with minimal padding waste (prefer zero waste).
    T_CHUNK, best_waste = 1, None
    for c in range(min(32, S), 0, -1):
        waste = (-S) % c
        if best_waste is None or waste < best_waste:
            best_waste, T_CHUNK = waste, c
        if waste == 0:
            break
    S_pad = _round_up(S, T_CHUNK)
    n_chunks = S_pad // T_CHUNK

    f32 = jnp.float32
    # ---- zero-padded, gate-concatenated, transposed parameters ----
    # Padded weight rows/cols are exactly 0 so padded lanes never leak into real lanes.
    wc_t = jnp.zeros((F, Hp), f32).at[:, :H].set(params["wc"].T)
    bc = jnp.zeros((1, Hp), f32).at[:, :H].set(params["bc"])
    wih_cat = jnp.zeros((Hp, 3 * Hp), f32)
    whh_cat = jnp.zeros((Hp, 3 * Hp), f32)
    bih_cat = jnp.zeros((1, 3 * Hp), f32)
    bhh_cat = jnp.zeros((1, 3 * Hp), f32)
    for g in range(3):                                     # gate order [r | z | n]
        wih_cat = wih_cat.at[:H, g * Hp:g * Hp + H].set(params["wih"][g * H:(g + 1) * H, :].T)
        whh_cat = whh_cat.at[:H, g * Hp:g * Hp + H].set(params["whh"][g * H:(g + 1) * H, :].T)
        bih_cat = bih_cat.at[0, g * Hp:g * Hp + H].set(params["bih"][g * H:(g + 1) * H])
        bhh_cat = bhh_cat.at[0, g * Hp:g * Hp + H].set(params["bhh"][g * H:(g + 1) * H])

    # ---- time-major, padded, 2-D input layout: rows of chunk c are contiguous ----
    x_p = jnp.zeros((Bp, S_pad, F), f32).at[:B, :S, :].set(x.astype(f32))
    x_tm = jnp.transpose(x_p, (1, 0, 2)).reshape(S_pad * Bp, F)            # (S_pad*Bp, F)

    out2d = pl.pallas_call(
        encoder_gru_kernel,
        out_shape=jax.ShapeDtypeStruct((S_pad * Bp, Hp), jnp.float32),
        grid_spec=pltpu.PrefetchScalarGridSpec(
            num_scalar_prefetch=0,
            grid=(n_chunks,),
            in_specs=[
                pl.BlockSpec((T_CHUNK * Bp, F), lambda c: (c, 0)),   # x chunk
                pl.BlockSpec((F, Hp), lambda c: (0, 0)),             # Wc^T
                pl.BlockSpec((1, Hp), lambda c: (0, 0)),             # bc
                pl.BlockSpec((Hp, 3 * Hp), lambda c: (0, 0)),        # Wih^T (gate-concat)
                pl.BlockSpec((1, 3 * Hp), lambda c: (0, 0)),         # bih   (gate-concat)
                pl.BlockSpec((Hp, 3 * Hp), lambda c: (0, 0)),        # Whh^T (gate-concat)
                pl.BlockSpec((1, 3 * Hp), lambda c: (0, 0)),         # bhh   (gate-concat)
            ],
            out_specs=pl.BlockSpec((T_CHUNK * Bp, Hp), lambda c: (c, 0)),
            scratch_shapes=[
                pltpu.VMEM((T_CHUNK * Bp, 3 * Hp), jnp.float32),     # staged x-gates
                pltpu.VMEM((Bp, Hp), jnp.float32),                   # carried hidden state
            ],
        ),
        compiler_params=pltpu.CompilerParams(
            dimension_semantics=("arbitrary",),                      # time is sequential
            vmem_limit_bytes=32 * 1024 * 1024,
        ),
    )(x_tm, wc_t, bc, wih_cat, bih_cat, whh_cat, bhh_cat)

    out_tm = out2d.reshape(S_pad, Bp, Hp)
    output = jnp.transpose(out_tm[:S, :B, :H], (1, 0, 2))            # (B, S, H) batch_first
    hidden_state = out_tm[S - 1, :B, :H][None]                       # (1, B, H)
    return output, hidden_state


# ----------------------------------------------------------------------------
# Pure-JAX reference (same math) for a correctness check.
# ----------------------------------------------------------------------------
def encoder_rnn_reference(x, params):
    B, S, F = x.shape
    H = params["wc"].shape[0]
    compressed = x.reshape(B * S, F) @ params["wc"].T + params["bc"]
    xg = (compressed @ params["wih"].T + params["bih"]).reshape(B, S, 3 * H)

    def step(h, xg_t):
        hg = h @ params["whh"].T + params["bhh"]
        r = jax.nn.sigmoid(xg_t[:, :H] + hg[:, :H])
        z = jax.nn.sigmoid(xg_t[:, H:2 * H] + hg[:, H:2 * H])
        n = jnp.tanh(xg_t[:, 2 * H:] + r * hg[:, 2 * H:])
        h_new = (1.0 - z) * n + z * h
        return h_new, h_new

    h0 = jnp.zeros((B, H), jnp.float32)
    h_last, outs = lax.scan(step, h0, xg.transpose(1, 0, 2))
    return outs.transpose(1, 0, 2), h_last[None]


# ----------------------------------------------------------------------------
def make_params(key, input_size, hidden_size):
    k = 1.0 / np.sqrt(hidden_size)
    keys = jax.random.split(key, 6)
    u = lambda kk, shape: jax.random.uniform(kk, shape, jnp.float32, -k, k)
    return {
        "wc": u(keys[0], (hidden_size, input_size)),        # nn.Linear weight
        "bc": u(keys[1], (hidden_size,)),                   # nn.Linear bias
        "wih": u(keys[2], (3 * hidden_size, hidden_size)),  # GRU weight_ih_l0 [r|z|n]
        "whh": u(keys[3], (3 * hidden_size, hidden_size)),  # GRU weight_hh_l0 [r|z|n]
        "bih": u(keys[4], (3 * hidden_size,)),
        "bhh": u(keys[5], (3 * hidden_size,)),
    }


if __name__ == "__main__":
    B, S, F, H = 2, 8, 64, 32
    key = jax.random.PRNGKey(0)
    kx, kp = jax.random.split(key)
    x = jax.random.normal(kx, (B, S, F), jnp.float32)
    params = make_params(kp, F, H)

    output, hidden = jax.jit(encoder_rnn_forward)(x, params)
    jax.block_until_ready((output, hidden))

    ref_out, ref_hid = encoder_rnn_reference(x, params)
    assert output.shape == (B, S, H) and hidden.shape == (1, B, H)
    assert np.allclose(np.asarray(output), np.asarray(ref_out), atol=1e-4, rtol=1e-4)
    assert np.allclose(np.asarray(hidden), np.asarray(ref_hid), atol=1e-4, rtol=1e-4)

    print("KERNEL_OK")
</pallas_src>

<mosaic_0001>
module attributes {stable_mosaic.version = 11 : i64} {
  func.func @encoder_gru_kernel(%arg0: i32, %arg1: memref<64x64xf32, #tpu.memory_space<vmem>>, %arg2: memref<64x128xf32, #tpu.memory_space<vmem>>, %arg3: memref<1x128xf32, #tpu.memory_space<vmem>>, %arg4: memref<128x384xf32, #tpu.memory_space<vmem>>, %arg5: memref<1x384xf32, #tpu.memory_space<vmem>>, %arg6: memref<128x384xf32, #tpu.memory_space<vmem>>, %arg7: memref<1x384xf32, #tpu.memory_space<vmem>>, %arg8: memref<64x128xf32, #tpu.memory_space<vmem>>, %arg9: memref<64x384xf32, #tpu.memory_space<vmem>>, %arg10: memref<8x128xf32, #tpu.memory_space<vmem>>) attributes {dimension_semantics = [#tpu.dimension_semantics<arbitrary>], iteration_bounds = array<i64: 1>, scalar_prefetch = 0 : i64, scratch_operands = 2 : i64, tpu.core_type = #tpu.core_type<tc>, window_params = [{transform_indices = @transform_0, window_bounds = array<i64: 64, 64>}, {pipeline_mode = #tpu.pipeline_mode<synchronous>, transform_indices = @transform_1, window_bounds = array<i64: 64, 128>}, {pipeline_mode = #tpu.pipeline_mode<synchronous>, transform_indices = @transform_2, window_bounds = array<i64: 1, 128>}, {pipeline_mode = #tpu.pipeline_mode<synchronous>, transform_indices = @transform_3, window_bounds = array<i64: 128, 384>}, {pipeline_mode = #tpu.pipeline_mode<synchronous>, transform_indices = @transform_4, window_bounds = array<i64: 1, 384>}, {pipeline_mode = #tpu.pipeline_mode<synchronous>, transform_indices = @transform_5, window_bounds = array<i64: 128, 384>}, {pipeline_mode = #tpu.pipeline_mode<synchronous>, transform_indices = @transform_6, window_bounds = array<i64: 1, 384>}, {transform_indices = @transform_7, window_bounds = array<i64: 64, 128>}]} {
    %c0_i32 = arith.constant 0 : i32
    %0 = arith.cmpi eq, %arg0, %c0_i32 : i32
    %1 = arith.extui %0 : i1 to i32
    %c0_i32_0 = arith.constant 0 : i32
    %2 = arith.cmpi ne, %1, %c0_i32_0 : i32
    scf.if %2 {
      %cst_92 = arith.constant 0.000000e+00 : f32
      %268 = vector.broadcast %cst_92 : f32 to vector<8x128xf32>
      %c0_93 = arith.constant 0 : index
      %c0_94 = arith.constant 0 : index
      %269 = vector.load %arg10[%c0_93, %c0_94] : memref<8x128xf32, #tpu.memory_space<vmem>>, vector<8x128xf32>
      tpu.vector_store %arg10[%c0_93, %c0_94], %268 {strides = array<i32>} : memref<8x128xf32, #tpu.memory_space<vmem>>, vector<8x128xf32>,
    } else {
    }
    %c0 = arith.constant 0 : index
    %c0_1 = arith.constant 0 : index
    %3 = vector.load %arg1[%c0, %c0_1] : memref<64x64xf32, #tpu.memory_space<vmem>>, vector<64x64xf32>
    %c0_2 = arith.constant 0 : index
    %c0_3 = arith.constant 0 : index
    %4 = vector.load %arg2[%c0_2, %c0_3] : memref<64x128xf32, #tpu.memory_space<vmem>>, vector<64x128xf32>
    %cst = arith.constant dense<0.000000e+00> : vector<64x128xf32>
    %5 = tpu.matmul %3, %4, %cst {dimension_numbers = #tpu.dot_dimension_numbers<[1], [0], [0], [1], [0, 0, 1, 1], [], []>} : vector<64x64xf32>, vector<64x128xf32>, vector<64x128xf32> -> vector<64x128xf32>
    %c0_4 = arith.constant 0 : index
    %c0_5 = arith.constant 0 : index
    %6 = vector.load %arg3[%c0_4, %c0_5] : memref<1x128xf32, #tpu.memory_space<vmem>>, vector<1x128xf32>
    %7 = vector.broadcast %6 : vector<1x128xf32> to vector<64x128xf32>
    %8 = arith.addf %5, %7 : vector<64x128xf32>
    %c0_6 = arith.constant 0 : index
    %c0_7 = arith.constant 0 : index
    %9 = vector.load %arg4[%c0_6, %c0_7] : memref<128x384xf32, #tpu.memory_space<vmem>>, vector<128x384xf32>
    %cst_8 = arith.constant dense<0.000000e+00> : vector<64x384xf32>
    %10 = tpu.matmul %8, %9, %cst_8 {dimension_numbers = #tpu.dot_dimension_numbers<[1], [0], [0], [1], [0, 0, 1, 1], [], []>} : vector<64x128xf32>, vector<128x384xf32>, vector<64x384xf32> -> vector<64x384xf32>
    %c0_9 = arith.constant 0 : index
    %c0_10 = arith.constant 0 : index
    %11 = vector.load %arg5[%c0_9, %c0_10] : memref<1x384xf32, #tpu.memory_space<vmem>>, vector<1x384xf32>
    %12 = vector.broadcast %11 : vector<1x384xf32> to vector<64x384xf32>
    %13 = arith.addf %10, %12 : vector<64x384xf32>
    %c0_11 = arith.constant 0 : index
    %c0_12 = arith.constant 0 : index
    %14 = vector.load %arg9[%c0_11, %c0_12] : memref<64x384xf32, #tpu.memory_space<vmem>>, vector<64x384xf32>
    tpu.vector_store %arg9[%c0_11, %c0_12], %13 {strides = array<i32>} : memref<64x384xf32, #tpu.memory_space<vmem>>, vector<64x384xf32>,
    %c0_13 = arith.constant 0 : index
    %c0_14 = arith.constant 0 : index
    %15 = vector.load %arg7[%c0_13, %c0_14] : memref<1x384xf32, #tpu.memory_space<vmem>>, vector<1x384xf32>
    %16 = vector.shape_cast %15 : vector<1x384xf32> to vector<1x384xf32>
    %17 = vector.broadcast %16 : vector<1x384xf32> to vector<8x384xf32>
    %c0_15 = arith.constant 0 : index
    %c0_16 = arith.constant 0 : index
    %18 = vector.load %arg10[%c0_15, %c0_16] : memref<8x128xf32, #tpu.memory_space<vmem>>, vector<8x128xf32>
    %c0_17 = arith.constant 0 : index
    %c0_18 = arith.constant 0 : index
    %19 = vector.load %arg6[%c0_17, %c0_18] : memref<128x384xf32, #tpu.memory_space<vmem>>, vector<128x384xf32>
    %cst_19 = arith.constant dense<0.000000e+00> : vector<8x384xf32>
    %20 = tpu.matmul %18, %19, %cst_19 {dimension_numbers = #tpu.dot_dimension_numbers<[1], [0], [0], [1], [0, 0, 1, 1], [], []>} : vector<8x128xf32>, vector<128x384xf32>, vector<8x384xf32> -> vector<8x384xf32>
    %21 = arith.addf %20, %17 : vector<8x384xf32>
    %c0_20 = arith.constant 0 : index
    %c0_21 = arith.constant 0 : index
    %22 = vector.load %arg9[%c0_20, %c0_21] : memref<64x384xf32, #tpu.memory_space<vmem>>, vector<8x384xf32>
    %23 = vector.extract_strided_slice %22 {offsets = [0, 0], sizes = [8, 128], strides = [1, 1]} : vector<8x384xf32> to vector<8x128xf32>
    %24 = vector.extract_strided_slice %21 {offsets = [0, 0], sizes = [8, 128], strides = [1, 1]} : vector<8x384xf32> to vector<8x128xf32>
    %25 = arith.addf %23, %24 : vector<8x128xf32>
    %26 = arith.negf %25 : vector<8x128xf32>
    %27 = math.exp %26 : vector<8x128xf32>
    %cst_22 = arith.constant 1.000000e+00 : f32
    %28 = vector.broadcast %cst_22 : f32 to vector<8x128xf32>
    %29 = arith.addf %28, %27 : vector<8x128xf32>
    %30 = arith.divf %28, %29 : vector<8x128xf32>
    %31 = vector.extract_strided_slice %22 {offsets = [0, 128], sizes = [8, 128], strides = [1, 1]} : vector<8x384xf32> to vector<8x128xf32>
    %32 = vector.extract_strided_slice %21 {offsets = [0, 128], sizes = [8, 128], strides = [1, 1]} : vector<8x384xf32> to vector<8x128xf32>
    %33 = arith.addf %31, %32 : vector<8x128xf32>
    %34 = arith.negf %33 : vector<8x128xf32>
    %35 = math.exp %34 : vector<8x128xf32>
    %cst_23 = arith.constant 1.000000e+00 : f32
    %36 = vector.broadcast %cst_23 : f32 to vector<8x128xf32>
    %37 = arith.addf %36, %35 : vector<8x128xf32>
    %38 = arith.divf %36, %37 : vector<8x128xf32>
    %39 = vector.extract_strided_slice %22 {offsets = [0, 256], sizes = [8, 128], strides = [1, 1]} : vector<8x384xf32> to vector<8x128xf32>
    %40 = vector.extract_strided_slice %21 {offsets = [0, 256], sizes = [8, 128], strides = [1, 1]} : vector<8x384xf32> to vector<8x128xf32>
    %41 = arith.mulf %30, %40 : vector<8x128xf32>
    %42 = arith.addf %39, %41 : vector<8x128xf32>
    %43 = math.tanh %42 : vector<8x128xf32>
    %cst_24 = arith.constant 1.000000e+00 : f32
    %44 = vector.broadcast %cst_24 : f32 to vector<8x128xf32>
    %45 = arith.subf %44, %38 : vector<8x128xf32>
    %46 = arith.mulf %45, %43 : vector<8x128xf32>
    %47 = arith.mulf %38, %18 : vector<8x128xf32>
    %48 = arith.addf %46, %47 : vector<8x128xf32>
    %c0_25 = arith.constant 0 : index
    %c0_26 = arith.constant 0 : index
    %49 = vector.load %arg8[%c0_25, %c0_26] : memref<64x128xf32, #tpu.memory_space<vmem>>, vector<8x128xf32>
    tpu.vector_store %arg8[%c0_25, %c0_26], %48 {strides = array<i32>} : memref<64x128xf32, #tpu.memory_space<vmem>>, vector<8x128xf32>,
    %c0_27 = arith.constant 0 : index
    %c0_28 = arith.constant 0 : index
    %50 = vector.load %arg6[%c0_27, %c0_28] : memref<128x384xf32, #tpu.memory_space<vmem>>, vector<128x384xf32>
    %cst_29 = arith.constant dense<0.000000e+00> : vector<8x384xf32>
    %51 = tpu.matmul %48, %50, %cst_29 {dimension_numbers = #tpu.dot_dimension_numbers<[1], [0], [0], [1], [0, 0, 1, 1], [], []>} : vector<8x128xf32>, vector<128x384xf32>, vector<8x384xf32> -> vector<8x384xf32>
    %52 = arith.addf %51, %17 : vector<8x384xf32>
    %c8 = arith.constant 8 : index
    %c0_30 = arith.constant 0 : index
    %53 = vector.load %arg9[%c8, %c0_30] : memref<64x384xf32, #tpu.memory_space<vmem>>, vector<8x384xf32>
    %54 = vector.extract_strided_slice %53 {offsets = [0, 0], sizes = [8, 128], strides = [1, 1]} : vector<8x384xf32> to vector<8x128xf32>
    %55 = vector.extract_strided_slice %52 {offsets = [0, 0], sizes = [8, 128], strides = [1, 1]} : vector<8x384xf32> to vector<8x128xf32>
    %56 = arith.addf %54, %55 : vector<8x128xf32>
    %57 = arith.negf %56 : vector<8x128xf32>
    %58 = math.exp %57 : vector<8x128xf32>
    %cst_31 = arith.constant 1.000000e+00 : f32
    %59 = vector.broadcast %cst_31 : f32 to vector<8x128xf32>
    %60 = arith.addf %59, %58 : vector<8x128xf32>
    %61 = arith.divf %59, %60 : vector<8x128xf32>
    %62 = vector.extract_strided_slice %53 {offsets = [0, 128], sizes = [8, 128], strides = [1, 1]} : vector<8x384xf32> to vector<8x128xf32>
    %63 = vector.extract_strided_slice %52 {offsets = [0, 128], sizes = [8, 128], strides = [1, 1]} : vector<8x384xf32> to vector<8x128xf32>
    %64 = arith.addf %62, %63 : vector<8x128xf32>
    %65 = arith.negf %64 : vector<8x128xf32>
    %66 = math.exp %65 : vector<8x128xf32>
    %cst_32 = arith.constant 1.000000e+00 : f32
    %67 = vector.broadcast %cst_32 : f32 to vector<8x128xf32>
    %68 = arith.addf %67, %66 : vector<8x128xf32>
    %69 = arith.divf %67, %68 : vector<8x128xf32>
    %70 = vector.extract_strided_slice %53 {offsets = [0, 256], sizes = [8, 128], strides = [1, 1]} : vector<8x384xf32> to vector<8x128xf32>
    %71 = vector.extract_strided_slice %52 {offsets = [0, 256], sizes = [8, 128], strides = [1, 1]} : vector<8x384xf32> to vector<8x128xf32>
    %72 = arith.mulf %61, %71 : vector<8x128xf32>
    %73 = arith.addf %70, %72 : vector<8x128xf32>
    %74 = math.tanh %73 : vector<8x128xf32>
    %cst_33 = arith.constant 1.000000e+00 : f32
    %75 = vector.broadcast %cst_33 : f32 to vector<8x128xf32>
    %76 = arith.subf %75, %69 : vector<8x128xf32>
    %77 = arith.mulf %76, %74 : vector<8x128xf32>
    %78 = arith.mulf %69, %48 : vector<8x128xf32>
    %79 = arith.addf %77, %78 : vector<8x128xf32>
    %c8_34 = arith.constant 8 : index
    %c0_35 = arith.constant 0 : index
    %80 = vector.load %arg8[%c8_34, %c0_35] : memref<64x128xf32, #tpu.memory_space<vmem>>, vector<8x128xf32>
    tpu.vector_store %arg8[%c8_34, %c0_35], %79 {strides = array<i32>} : memref<64x128xf32, #tpu.memory_space<vmem>>, vector<8x128xf32>,
    %c0_36 = arith.constant 0 : index
    %c0_37 = arith.constant 0 : index
    %81 = vector.load %arg6[%c0_36, %c0_37] : memref<128x384xf32, #tpu.memory_space<vmem>>, vector<128x384xf32>
    %cst_38 = arith.constant dense<0.000000e+00> : vector<8x384xf32>
    %82 = tpu.matmul %79, %81, %cst_38 {dimension_numbers = #tpu.dot_dimension_numbers<[1], [0], [0], [1], [0, 0, 1, 1], [], []>} : vector<8x128xf32>, vector<128x384xf32>, vector<8x384xf32> -> vector<8x384xf32>
    %83 = arith.addf %82, %17 : vector<8x384xf32>
    %c16 = arith.constant 16 : index
    %c0_39 = arith.constant 0 : index
    %84 = vector.load %arg9[%c16, %c0_39] : memref<64x384xf32, #tpu.memory_space<vmem>>, vector<8x384xf32>
    %85 = vector.extract_strided_slice %84 {offsets = [0, 0], sizes = [8, 128], strides = [1, 1]} : vector<8x384xf32> to vector<8x128xf32>
    %86 = vector.extract_strided_slice %83 {offsets = [0, 0], sizes = [8, 128], strides = [1, 1]} : vector<8x384xf32> to vector<8x128xf32>
    %87 = arith.addf %85, %86 : vector<8x128xf32>
    %88 = arith.negf %87 : vector<8x128xf32>
    %89 = math.exp %88 : vector<8x128xf32>
    %cst_40 = arith.constant 1.000000e+00 : f32
    %90 = vector.broadcast %cst_40 : f32 to vector<8x128xf32>
    %91 = arith.addf %90, %89 : vector<8x128xf32>
    %92 = arith.divf %90, %91 : vector<8x128xf32>
    %93 = vector.extract_strided_slice %84 {offsets = [0, 128], sizes = [8, 128], strides = [1, 1]} : vector<8x384xf32> to vector<8x128xf32>
    %94 = vector.extract_strided_slice %83 {offsets = [0, 128], sizes = [8, 128], strides = [1, 1]} : vector<8x384xf32> to vector<8x128xf32>
    %95 = arith.addf %93, %94 : vector<8x128xf32>
    %96 = arith.negf %95 : vector<8x128xf32>
    %97 = math.exp %96 : vector<8x128xf32>
    %cst_41 = arith.constant 1.000000e+00 : f32
    %98 = vector.broadcast %cst_41 : f32 to vector<8x128xf32>
    %99 = arith.addf %98, %97 : vector<8x128xf32>
    %100 = arith.divf %98, %99 : vector<8x128xf32>
    %101 = vector.extract_strided_slice %84 {offsets = [0, 256], sizes = [8, 128], strides = [1, 1]} : vector<8x384xf32> to vector<8x128xf32>
    %102 = vector.extract_strided_slice %83 {offsets = [0, 256], sizes = [8, 128], strides = [1, 1]} : vector<8x384xf32> to vector<8x128xf32>
    %103 = arith.mulf %92, %102 : vector<8x128xf32>
    %104 = arith.addf %101, %103 : vector<8x128xf32>
    %105 = math.tanh %104 : vector<8x128xf32>
    %cst_42 = arith.constant 1.000000e+00 : f32
    %106 = vector.broadcast %cst_42 : f32 to vector<8x128xf32>
    %107 = arith.subf %106, %100 : vector<8x128xf32>
    %108 = arith.mulf %107, %105 : vector<8x128xf32>
    %109 = arith.mulf %100, %79 : vector<8x128xf32>
    %110 = arith.addf %108, %109 : vector<8x128xf32>
    %c16_43 = arith.constant 16 : index
    %c0_44 = arith.constant 0 : index
    %111 = vector.load %arg8[%c16_43, %c0_44] : memref<64x128xf32, #tpu.memory_space<vmem>>, vector<8x128xf32>
    tpu.vector_store %arg8[%c16_43, %c0_44], %110 {strides = array<i32>} : memref<64x128xf32, #tpu.memory_space<vmem>>, vector<8x128xf32>,
    %c0_45 = arith.constant 0 : index
    %c0_46 = arith.constant 0 : index
    %112 = vector.load %arg6[%c0_45, %c0_46] : memref<128x384xf32, #tpu.memory_space<vmem>>, vector<128x384xf32>
    %cst_47 = arith.constant dense<0.000000e+00> : vector<8x384xf32>
    %113 = tpu.matmul %110, %112, %cst_47 {dimension_numbers = #tpu.dot_dimension_numbers<[1], [0], [0], [1], [0, 0, 1, 1], [], []>} : vector<8x128xf32>, vector<128x384xf32>, vector<8x384xf32> -> vector<8x384xf32>
    %114 = arith.addf %113, %17 : vector<8x384xf32>
    %c24 = arith.constant 24 : index
    %c0_48 = arith.constant 0 : index
    %115 = vector.load %arg9[%c24, %c0_48] : memref<64x384xf32, #tpu.memory_space<vmem>>, vector<8x384xf32>
    %116 = vector.extract_strided_slice %115 {offsets = [0, 0], sizes = [8, 128], strides = [1, 1]} : vector<8x384xf32> to vector<8x128xf32>
    %117 = vector.extract_strided_slice %114 {offsets = [0, 0], sizes = [8, 128], strides = [1, 1]} : vector<8x384xf32> to vector<8x128xf32>
    %118 = arith.addf %116, %117 : vector<8x128xf32>
    %119 = arith.negf %118 : vector<8x128xf32>
    %120 = math.exp %119 : vector<8x128xf32>
    %cst_49 = arith.constant 1.000000e+00 : f32
    %121 = vector.broadcast %cst_49 : f32 to vector<8x128xf32>
    %122 = arith.addf %121, %120 : vector<8x128xf32>
    %123 = arith.divf %121, %122 : vector<8x128xf32>
    %124 = vector.extract_strided_slice %115 {offsets = [0, 128], sizes = [8, 128], strides = [1, 1]} : vector<8x384xf32> to vector<8x128xf32>
    %125 = vector.extract_strided_slice %114 {offsets = [0, 128], sizes = [8, 128], strides = [1, 1]} : vector<8x384xf32> to vector<8x128xf32>
    %126 = arith.addf %124, %125 : vector<8x128xf32>
    %127 = arith.negf %126 : vector<8x128xf32>
    %128 = math.exp %127 : vector<8x128xf32>
    %cst_50 = arith.constant 1.000000e+00 : f32
    %129 = vector.broadcast %cst_50 : f32 to vector<8x128xf32>
    %130 = arith.addf %129, %128 : vector<8x128xf32>
    %131 = arith.divf %129, %130 : vector<8x128xf32>
    %132 = vector.extract_strided_slice %115 {offsets = [0, 256], sizes = [8, 128], strides = [1, 1]} : vector<8x384xf32> to vector<8x128xf32>
    %133 = vector.extract_strided_slice %114 {offsets = [0, 256], sizes = [8, 128], strides = [1, 1]} : vector<8x384xf32> to vector<8x128xf32>
    %134 = arith.mulf %123, %133 : vector<8x128xf32>
    %135 = arith.addf %132, %134 : vector<8x128xf32>
    %136 = math.tanh %135 : vector<8x128xf32>
    %cst_51 = arith.constant 1.000000e+00 : f32
    %137 = vector.broadcast %cst_51 : f32 to vector<8x128xf32>
    %138 = arith.subf %137, %131 : vector<8x128xf32>
    %139 = arith.mulf %138, %136 : vector<8x128xf32>
    %140 = arith.mulf %131, %110 : vector<8x128xf32>
    %141 = arith.addf %139, %140 : vector<8x128xf32>
    %c24_52 = arith.constant 24 : index
    %c0_53 = arith.constant 0 : index
    %142 = vector.load %arg8[%c24_52, %c0_53] : memref<64x128xf32, #tpu.memory_space<vmem>>, vector<8x128xf32>
    tpu.vector_store %arg8[%c24_52, %c0_53], %141 {strides = array<i32>} : memref<64x128xf32, #tpu.memory_space<vmem>>, vector<8x128xf32>,
    %c0_54 = arith.constant 0 : index
    %c0_55 = arith.constant 0 : index
    %143 = vector.load %arg6[%c0_54, %c0_55] : memref<128x384xf32, #tpu.memory_space<vmem>>, vector<128x384xf32>
    %cst_56 = arith.constant dense<0.000000e+00> : vector<8x384xf32>
    %144 = tpu.matmul %141, %143, %cst_56 {dimension_numbers = #tpu.dot_dimension_numbers<[1], [0], [0], [1], [0, 0, 1, 1], [], []>} : vector<8x128xf32>, vector<128x384xf32>, vector<8x384xf32> -> vector<8x384xf32>
    %145 = arith.addf %144, %17 : vector<8x384xf32>
    %c32 = arith.constant 32 : index
    %c0_57 = arith.constant 0 : index
    %146 = vector.load %arg9[%c32, %c0_57] : memref<64x384xf32, #tpu.memory_space<vmem>>, vector<8x384xf32>
    %147 = vector.extract_strided_slice %146 {offsets = [0, 0], sizes = [8, 128], strides = [1, 1]} : vector<8x384xf32> to vector<8x128xf32>
    %148 = vector.extract_strided_slice %145 {offsets = [0, 0], sizes = [8, 128], strides = [1, 1]} : vector<8x384xf32> to vector<8x128xf32>
    %149 = arith.addf %147, %148 : vector<8x128xf32>
    %150 = arith.negf %149 : vector<8x128xf32>
    %151 = math.exp %150 : vector<8x128xf32>
    %cst_58 = arith.constant 1.000000e+00 : f32
    %152 = vector.broadcast %cst_58 : f32 to vector<8x128xf32>
    %153 = arith.addf %152, %151 : vector<8x128xf32>
    %154 = arith.divf %152, %153 : vector<8x128xf32>
    %155 = vector.extract_strided_slice %146 {offsets = [0, 128], sizes = [8, 128], strides = [1, 1]} : vector<8x384xf32> to vector<8x128xf32>
    %156 = vector.extract_strided_slice %145 {offsets = [0, 128], sizes = [8, 128], strides = [1, 1]} : vector<8x384xf32> to vector<8x128xf32>
    %157 = arith.addf %155, %156 : vector<8x128xf32>
    %158 = arith.negf %157 : vector<8x128xf32>
    %159 = math.exp %158 : vector<8x128xf32>
    %cst_59 = arith.constant 1.000000e+00 : f32
    %160 = vector.broadcast %cst_59 : f32 to vector<8x128xf32>
    %161 = arith.addf %160, %159 : vector<8x128xf32>
    %162 = arith.divf %160, %161 : vector<8x128xf32>
    %163 = vector.extract_strided_slice %146 {offsets = [0, 256], sizes = [8, 128], strides = [1, 1]} : vector<8x384xf32> to vector<8x128xf32>
    %164 = vector.extract_strided_slice %145 {offsets = [0, 256], sizes = [8, 128], strides = [1, 1]} : vector<8x384xf32> to vector<8x128xf32>
    %165 = arith.mulf %154, %164 : vector<8x128xf32>
    %166 = arith.addf %163, %165 : vector<8x128xf32>
    %167 = math.tanh %166 : vector<8x128xf32>
    %cst_60 = arith.constant 1.000000e+00 : f32
    %168 = vector.broadcast %cst_60 : f32 to vector<8x128xf32>
    %169 = arith.subf %168, %162 : vector<8x128xf32>
    %170 = arith.mulf %169, %167 : vector<8x128xf32>
    %171 = arith.mulf %162, %141 : vector<8x128xf32>
    %172 = arith.addf %170, %171 : vector<8x128xf32>
    %c32_61 = arith.constant 32 : index
    %c0_62 = arith.constant 0 : index
    %173 = vector.load %arg8[%c32_61, %c0_62] : memref<64x128xf32, #tpu.memory_space<vmem>>, vector<8x128xf32>
    tpu.vector_store %arg8[%c32_61, %c0_62], %172 {strides = array<i32>} : memref<64x128xf32, #tpu.memory_space<vmem>>, vector<8x128xf32>,
    %c0_63 = arith.constant 0 : index
    %c0_64 = arith.constant 0 : index
    %174 = vector.load %arg6[%c0_63, %c0_64] : memref<128x384xf32, #tpu.memory_space<vmem>>, vector<128x384xf32>
    %cst_65 = arith.constant dense<0.000000e+00> : vector<8x384xf32>
    %175 = tpu.matmul %172, %174, %cst_65 {dimension_numbers = #tpu.dot_dimension_numbers<[1], [0], [0], [1], [0, 0, 1, 1], [], []>} : vector<8x128xf32>, vector<128x384xf32>, vector<8x384xf32> -> vector<8x384xf32>
    %176 = arith.addf %175, %17 : vector<8x384xf32>
    %c40 = arith.constant 40 : index
    %c0_66 = arith.constant 0 : index
    %177 = vector.load %arg9[%c40, %c0_66] : memref<64x384xf32, #tpu.memory_space<vmem>>, vector<8x384xf32>
    %178 = vector.extract_strided_slice %177 {offsets = [0, 0], sizes = [8, 128], strides = [1, 1]} : vector<8x384xf32> to vector<8x128xf32>
    %179 = vector.extract_strided_slice %176 {offsets = [0, 0], sizes = [8, 128], strides = [1, 1]} : vector<8x384xf32> to vector<8x128xf32>
    %180 = arith.addf %178, %179 : vector<8x128xf32>
    %181 = arith.negf %180 : vector<8x128xf32>
    %182 = math.exp %181 : vector<8x128xf32>
    %cst_67 = arith.constant 1.000000e+00 : f32
    %183 = vector.broadcast %cst_67 : f32 to vector<8x128xf32>
    %184 = arith.addf %183, %182 : vector<8x128xf32>
    %185 = arith.divf %183, %184 : vector<8x128xf32>
    %186 = vector.extract_strided_slice %177 {offsets = [0, 128], sizes = [8, 128], strides = [1, 1]} : vector<8x384xf32> to vector<8x128xf32>
    %187 = vector.extract_strided_slice %176 {offsets = [0, 128], sizes = [8, 128], strides = [1, 1]} : vector<8x384xf32> to vector<8x128xf32>
    %188 = arith.addf %186, %187 : vector<8x128xf32>
    %189 = arith.negf %188 : vector<8x128xf32>
    %190 = math.exp %189 : vector<8x128xf32>
    %cst_68 = arith.constant 1.000000e+00 : f32
    %191 = vector.broadcast %cst_68 : f32 to vector<8x128xf32>
    %192 = arith.addf %191, %190 : vector<8x128xf32>
    %193 = arith.divf %191, %192 : vector<8x128xf32>
    %194 = vector.extract_strided_slice %177 {offsets = [0, 256], sizes = [8, 128], strides = [1, 1]} : vector<8x384xf32> to vector<8x128xf32>
    %195 = vector.extract_strided_slice %176 {offsets = [0, 256], sizes = [8, 128], strides = [1, 1]} : vector<8x384xf32> to vector<8x128xf32>
    %196 = arith.mulf %185, %195 : vector<8x128xf32>
    %197 = arith.addf %194, %196 : vector<8x128xf32>
    %198 = math.tanh %197 : vector<8x128xf32>
    %cst_69 = arith.constant 1.000000e+00 : f32
    %199 = vector.broadcast %cst_69 : f32 to vector<8x128xf32>
    %200 = arith.subf %199, %193 : vector<8x128xf32>
    %201 = arith.mulf %200, %198 : vector<8x128xf32>
    %202 = arith.mulf %193, %172 : vector<8x128xf32>
    %203 = arith.addf %201, %202 : vector<8x128xf32>
    %c40_70 = arith.constant 40 : index
    %c0_71 = arith.constant 0 : index
    %204 = vector.load %arg8[%c40_70, %c0_71] : memref<64x128xf32, #tpu.memory_space<vmem>>, vector<8x128xf32>
    tpu.vector_store %arg8[%c40_70, %c0_71], %203 {strides = array<i32>} : memref<64x128xf32, #tpu.memory_space<vmem>>, vector<8x128xf32>,
    %c0_72 = arith.constant 0 : index
    %c0_73 = arith.constant 0 : index
    %205 = vector.load %arg6[%c0_72, %c0_73] : memref<128x384xf32, #tpu.memory_space<vmem>>, vector<128x384xf32>
    %cst_74 = arith.constant dense<0.000000e+00> : vector<8x384xf32>
    %206 = tpu.matmul %203, %205, %cst_74 {dimension_numbers = #tpu.dot_dimension_numbers<[1], [0], [0], [1], [0, 0, 1, 1], [], []>} : vector<8x128xf32>, vector<128x384xf32>, vector<8x384xf32> -> vector<8x384xf32>
    %207 = arith.addf %206, %17 : vector<8x384xf32>
    %c48 = arith.constant 48 : index
    %c0_75 = arith.constant 0 : index
    %208 = vector.load %arg9[%c48, %c0_75] : memref<64x384xf32, #tpu.memory_space<vmem>>, vector<8x384xf32>
    %209 = vector.extract_strided_slice %208 {offsets = [0, 0], sizes = [8, 128], strides = [1, 1]} : vector<8x384xf32> to vector<8x128xf32>
    %210 = vector.extract_strided_slice %207 {offsets = [0, 0], sizes = [8, 128], strides = [1, 1]} : vector<8x384xf32> to vector<8x128xf32>
    %211 = arith.addf %209, %210 : vector<8x128xf32>
    %212 = arith.negf %211 : vector<8x128xf32>
    %213 = math.exp %212 : vector<8x128xf32>
    %cst_76 = arith.constant 1.000000e+00 : f32
    %214 = vector.broadcast %cst_76 : f32 to vector<8x128xf32>
    %215 = arith.addf %214, %213 : vector<8x128xf32>
    %216 = arith.divf %214, %215 : vector<8x128xf32>
    %217 = vector.extract_strided_slice %208 {offsets = [0, 128], sizes = [8, 128], strides = [1, 1]} : vector<8x384xf32> to vector<8x128xf32>
    %218 = vector.extract_strided_slice %207 {offsets = [0, 128], sizes = [8, 128], strides = [1, 1]} : vector<8x384xf32> to vector<8x128xf32>
    %219 = arith.addf %217, %218 : vector<8x128xf32>
    %220 = arith.negf %219 : vector<8x128xf32>
    %221 = math.exp %220 : vector<8x128xf32>
    %cst_77 = arith.constant 1.000000e+00 : f32
    %222 = vector.broadcast %cst_77 : f32 to vector<8x128xf32>
    %223 = arith.addf %222, %221 : vector<8x128xf32>
    %224 = arith.divf %222, %223 : vector<8x128xf32>
    %225 = vector.extract_strided_slice %208 {offsets = [0, 256], sizes = [8, 128], strides = [1, 1]} : vector<8x384xf32> to vector<8x128xf32>
    %226 = vector.extract_strided_slice %207 {offsets = [0, 256], sizes = [8, 128], strides = [1, 1]} : vector<8x384xf32> to vector<8x128xf32>
    %227 = arith.mulf %216, %226 : vector<8x128xf32>
    %228 = arith.addf %225, %227 : vector<8x128xf32>
    %229 = math.tanh %228 : vector<8x128xf32>
    %cst_78 = arith.constant 1.000000e+00 : f32
    %230 = vector.broadcast %cst_78 : f32 to vector<8x128xf32>
    %231 = arith.subf %230, %224 : vector<8x128xf32>
    %232 = arith.mulf %231, %229 : vector<8x128xf32>
    %233 = arith.mulf %224, %203 : vector<8x128xf32>
    %234 = arith.addf %232, %233 : vector<8x128xf32>
    %c48_79 = arith.constant 48 : index
    %c0_80 = arith.constant 0 : index
    %235 = vector.load %arg8[%c48_79, %c0_80] : memref<64x128xf32, #tpu.memory_space<vmem>>, vector<8x128xf32>
    tpu.vector_store %arg8[%c48_79, %c0_80], %234 {strides = array<i32>} : memref<64x128xf32, #tpu.memory_space<vmem>>, vector<8x128xf32>,
    %c0_81 = arith.constant 0 : index
    %c0_82 = arith.constant 0 : index
    %236 = vector.load %arg6[%c0_81, %c0_82] : memref<128x384xf32, #tpu.memory_space<vmem>>, vector<128x384xf32>
    %cst_83 = arith.constant dense<0.000000e+00> : vector<8x384xf32>
    %237 = tpu.matmul %234, %236, %cst_83 {dimension_numbers = #tpu.dot_dimension_numbers<[1], [0], [0], [1], [0, 0, 1, 1], [], []>} : vector<8x128xf32>, vector<128x384xf32>, vector<8x384xf32> -> vector<8x384xf32>
    %238 = arith.addf %237, %17 : vector<8x384xf32>
    %c56 = arith.constant 56 : index
    %c0_84 = arith.constant 0 : index
    %239 = vector.load %arg9[%c56, %c0_84] : memref<64x384xf32, #tpu.memory_space<vmem>>, vector<8x384xf32>
    %240 = vector.extract_strided_slice %239 {offsets = [0, 0], sizes = [8, 128], strides = [1, 1]} : vector<8x384xf32> to vector<8x128xf32>
    %241 = vector.extract_strided_slice %238 {offsets = [0, 0], sizes = [8, 128], strides = [1, 1]} : vector<8x384xf32> to vector<8x128xf32>
    %242 = arith.addf %240, %241 : vector<8x128xf32>
    %243 = arith.negf %242 : vector<8x128xf32>
    %244 = math.exp %243 : vector<8x128xf32>
    %cst_85 = arith.constant 1.000000e+00 : f32
    %245 = vector.broadcast %cst_85 : f32 to vector<8x128xf32>
    %246 = arith.addf %245, %244 : vector<8x128xf32>
    %247 = arith.divf %245, %246 : vector<8x128xf32>
    %248 = vector.extract_strided_slice %239 {offsets = [0, 128], sizes = [8, 128], strides = [1, 1]} : vector<8x384xf32> to vector<8x128xf32>
    %249 = vector.extract_strided_slice %238 {offsets = [0, 128], sizes = [8, 128], strides = [1, 1]} : vector<8x384xf32> to vector<8x128xf32>
    %250 = arith.addf %248, %249 : vector<8x128xf32>
    %251 = arith.negf %250 : vector<8x128xf32>
    %252 = math.exp %251 : vector<8x128xf32>
    %cst_86 = arith.constant 1.000000e+00 : f32
    %253 = vector.broadcast %cst_86 : f32 to vector<8x128xf32>
    %254 = arith.addf %253, %252 : vector<8x128xf32>
    %255 = arith.divf %253, %254 : vector<8x128xf32>
    %256 = vector.extract_strided_slice %239 {offsets = [0, 256], sizes = [8, 128], strides = [1, 1]} : vector<8x384xf32> to vector<8x128xf32>
    %257 = vector.extract_strided_slice %238 {offsets = [0, 256], sizes = [8, 128], strides = [1, 1]} : vector<8x384xf32> to vector<8x128xf32>
    %258 = arith.mulf %247, %257 : vector<8x128xf32>
    %259 = arith.addf %256, %258 : vector<8x128xf32>
    %260 = math.tanh %259 : vector<8x128xf32>
    %cst_87 = arith.constant 1.000000e+00 : f32
    %261 = vector.broadcast %cst_87 : f32 to vector<8x128xf32>
    %262 = arith.subf %261, %255 : vector<8x128xf32>
    %263 = arith.mulf %262, %260 : vector<8x128xf32>
    %264 = arith.mulf %255, %234 : vector<8x128xf32>
    %265 = arith.addf %263, %264 : vector<8x128xf32>
    %c56_88 = arith.constant 56 : index
    %c0_89 = arith.constant 0 : index
    %266 = vector.load %arg8[%c56_88, %c0_89] : memref<64x128xf32, #tpu.memory_space<vmem>>, vector<8x128xf32>
    tpu.vector_store %arg8[%c56_88, %c0_89], %265 {strides = array<i32>} : memref<64x128xf32, #tpu.memory_space<vmem>>, vector<8x128xf32>,
    %c0_90 = arith.constant 0 : index
    %c0_91 = arith.constant 0 : index
    %267 = vector.load %arg10[%c0_90, %c0_91] : memref<8x128xf32, #tpu.memory_space<vmem>>, vector<8x128xf32>
    tpu.vector_store %arg10[%c0_90, %c0_91], %265 {strides = array<i32>} : memref<8x128xf32, #tpu.memory_space<vmem>>, vector<8x128xf32>,
    return
  }
  func.func @transform_0(%arg0: i32) -> (i32, i32) {
    %c0_i32 = arith.constant 0 : i32
    %c0_i32_0 = arith.constant 0 : i32
    return %arg0, %c0_i32 : i32, i32
  }
  func.func @transform_1(%arg0: i32) -> (i32, i32) {
    %c0_i32 = arith.constant 0 : i32
    %c0_i32_0 = arith.constant 0 : i32
    %c0_i32_1 = arith.constant 0 : i32
    return %c0_i32, %c0_i32_0 : i32, i32
  }
  func.func @transform_2(%arg0: i32) -> (i32, i32) {
    %c0_i32 = arith.constant 0 : i32
    %c0_i32_0 = arith.constant 0 : i32
    %c0_i32_1 = arith.constant 0 : i32
    return %c0_i32, %c0_i32_0 : i32, i32
  }
  func.func @transform_3(%arg0: i32) -> (i32, i32) {
    %c0_i32 = arith.constant 0 : i32
    %c0_i32_0 = arith.constant 0 : i32
    %c0_i32_1 = arith.constant 0 : i32
    return %c0_i32, %c0_i32_0 : i32, i32
  }
  func.func @transform_4(%arg0: i32) -> (i32, i32) {
    %c0_i32 = arith.constant 0 : i32
    %c0_i32_0 = arith.constant 0 : i32
    %c0_i32_1 = arith.constant 0 : i32
    return %c0_i32, %c0_i32_0 : i32, i32
  }
  func.func @transform_5(%arg0: i32) -> (i32, i32) {
    %c0_i32 = arith.constant 0 : i32
    %c0_i32_0 = arith.constant 0 : i32
    %c0_i32_1 = arith.constant 0 : i32
    return %c0_i32, %c0_i32_0 : i32, i32
  }
  func.func @transform_6(%arg0: i32) -> (i32, i32) {
    %c0_i32 = arith.constant 0 : i32
    %c0_i32_0 = arith.constant 0 : i32
    %c0_i32_1 = arith.constant 0 : i32
    return %c0_i32, %c0_i32_0 : i32, i32
  }
  func.func @transform_7(%arg0: i32) -> (i32, i32) {
    %c0_i32 = arith.constant 0 : i32
    %c0_i32_0 = arith.constant 0 : i32
    return %arg0, %c0_i32 : i32, i32
  }
}

</mosaic_0001>

<llo_original>
// kernel: encoder_rnn_forward.1
$region0: #{encoder_rnn_forward.1}
  #allocation0 [shape = 'u32[]', space=smem, size = 0x4, offset = 0x4, fixed_abs, tag = 'smem constant byte address 0x4 - core index']
  #allocation1 [shape = 'u32[144,128]{1,0:T(1,128)}', space=vmem, size = 0x12000, scoped, tag = 'internal scratch']
  #allocation2 [shape = 'f32[64,384]{1,0:T(8,128)}', space=vmem, size = 0x18000, scoped, tag = 'scratch operand']
  #allocation3 [shape = 'f32[8,128]{1,0:T(8,128)}', space=vmem, size = 0x1000, scoped, tag = 'scratch operand']
  %s0 = inlined_call_operand.vmem [shape: f32[64,64], index: 0, kind: input, shape index: {}]
  %s1 = inlined_call_operand.vmem [shape: f32[64,128], index: 1, kind: input, shape index: {}]
  %s2 = inlined_call_operand.vmem [shape: f32[1,128], index: 2, kind: input, shape index: {}]
  %s3 = inlined_call_operand.vmem [shape: f32[128,384], index: 3, kind: input, shape index: {}]
  %s4 = inlined_call_operand.vmem [shape: f32[1,384], index: 4, kind: input, shape index: {}]
  %s5 = inlined_call_operand.vmem [shape: f32[128,384], index: 5, kind: input, shape index: {}]
  %s6 = inlined_call_operand.vmem [shape: f32[1,384], index: 6, kind: input, shape index: {}]
  %s7 = inlined_call_operand.vmem [shape: f32[64,128], index: 7, kind: output, shape index: {}]
  %s8 = sld [smem:[#allocation0]]
  $region42: #{encoder_rnn_forward.1} parent=0
    _
  %s10 = ssub.s32 1, %s8
  %s11 = scalar_select 0, %s10, %s8
  // Predicated region
  $region2: #{encoder_rnn_forward.1} parent=0 // pred_check
    _
  $region3: #{encoder_rnn_forward.1} parent=0 // pred_check_branch
    %13 = sbr.rel (0) target = $region5
  $region4: #{encoder_rnn_forward.1} parent=0 // pred_region
    _
  $region5: #{encoder_rnn_forward.1} parent=0 // pred_fallthru
    _
  // Predicated region
  $region6: #{encoder_rnn_forward.1} parent=0 // pred_check
    _
  $region7: #{encoder_rnn_forward.1} parent=0 // pred_check_branch
    %15 = sbr.rel (0) target = $region9
  $region8: #{encoder_rnn_forward.1} parent=0 // pred_region
    _
  $region9: #{encoder_rnn_forward.1} parent=0 // pred_fallthru
    _
  // Predicated region
  $region10: #{encoder_rnn_forward.1} parent=0 // pred_check
    _
  $region11: #{encoder_rnn_forward.1} parent=0 // pred_check_branch
    %17 = sbr.rel (0) target = $region13
  $region12: #{encoder_rnn_forward.1} parent=0 // pred_region
    _
  $region13: #{encoder_rnn_forward.1} parent=0 // pred_fallthru
    _
  // Predicated region
  $region14: #{encoder_rnn_forward.1} parent=0 // pred_check
    _
  $region15: #{encoder_rnn_forward.1} parent=0 // pred_check_branch
    %19 = sbr.rel (0) target = $region17
  $region16: #{encoder_rnn_forward.1} parent=0 // pred_region
    _
  $region17: #{encoder_rnn_forward.1} parent=0 // pred_fallthru
    _
  // Predicated region
  $region18: #{encoder_rnn_forward.1} parent=0 // pred_check
    _
  $region19: #{encoder_rnn_forward.1} parent=0 // pred_check_branch
    %21 = sbr.rel (0) target = $region21
  $region20: #{encoder_rnn_forward.1} parent=0 // pred_region
    _
  $region21: #{encoder_rnn_forward.1} parent=0 // pred_fallthru
    _
  // Predicated region
  $region22: #{encoder_rnn_forward.1} parent=0 // pred_check
    _
  $region23: #{encoder_rnn_forward.1} parent=0 // pred_check_branch
    %23 = sbr.rel (0) target = $region25
  $region24: #{encoder_rnn_forward.1} parent=0 // pred_region
    _
  $region25: #{encoder_rnn_forward.1} parent=0 // pred_fallthru
    _
  // Predicated region
  $region26: #{encoder_rnn_forward.1} parent=0 // pred_check
    _
  $region27: #{encoder_rnn_forward.1} parent=0 // pred_check_branch
    %25 = sbr.rel (0) target = $region29
  $region28: #{encoder_rnn_forward.1} parent=0 // pred_region
    _
  $region29: #{encoder_rnn_forward.1} parent=0 // pred_fallthru
    _
  %p26 = scmp.eq.s32.totalorder 0, 0
  // Predicated region
  $region30: #{encoder_rnn_forward.1} parent=0 // pred_check
    %p27 = pneg %p26
  $region31: #{encoder_rnn_forward.1} parent=0 // pred_check_branch
    %29 = sbr.rel (%p27) target = $region33
  $region32: #{encoder_rnn_forward.1} parent=0 // pred_region
    %30 = vst [vmem:[#allocation3] sm:$0xff] 0.0
  $region33: #{encoder_rnn_forward.1} parent=0 // pred_fallthru
    _
  %v31 = vld [vmem:[%s0] sm:$0xff]
  %v32 = vld [vmem:[%s0 + $0x8] sm:$0xff]
  %v33 = vld [vmem:[%s0 + $0x10] sm:$0xff]
  %v34 = vld [vmem:[%s0 + $0x18] sm:$0xff]
  %v35 = vld [vmem:[%s0 + $0x20] sm:$0xff]
  %v36 = vld [vmem:[%s0 + $0x28] sm:$0xff]
  %v37 = vld [vmem:[%s0 + $0x30] sm:$0xff]
  %v38 = vld [vmem:[%s0 + $0x38] sm:$0xff]
  %v39 = vld [vmem:[%s1] sm:$0xff]
  %v40 = vld [vmem:[%s1 + $0x8] sm:$0xff]
  %v41 = vld [vmem:[%s1 + $0x10] sm:$0xff]
  %v42 = vld [vmem:[%s1 + $0x18] sm:$0xff]
  %v43 = vld [vmem:[%s1 + $0x20] sm:$0xff]
  %v44 = vld [vmem:[%s1 + $0x28] sm:$0xff]
  %v45 = vld [vmem:[%s1 + $0x30] sm:$0xff]
  %v46 = vld [vmem:[%s1 + $0x38] sm:$0xff]
  %v47 = vld [vmem:[%s2] sm:$0x1]
  %v49 = vlaneseq
  %v50 = vshrl.u32 %v49, 7
  %v51 = vsub.s32 0, %v50
  %v52 = vrot.slane %v47, %v51
  %vm54 = vcmask 523264
  %v56 = vsel %vm54, %v31, 0
  %v59 = vsel %vm54, %v32, 0
  %v62 = vsel %vm54, %v33, 0
  %v65 = vsel %vm54, %v34, 0
  %v68 = vsel %vm54, %v35, 0
  %v71 = vsel %vm54, %v36, 0
  %v74 = vsel %vm54, %v37, 0
  %v77 = vsel %vm54, %v38, 0
  %79 = vmatprep.subr.mxu0 0.0
  %80 = vmatpush1.msra.mxu0 0.0
  %81 = vmatprep.subr.mxu0 0.0
  %82 = vmatpush1.msra.mxu0 0.0
  %83 = vmatprep.subr.mxu0 0.0
  %84 = vmatpush1.msra.mxu0 0.0
  %85 = vmatprep.subr.mxu0 0.0
  %86 = vmatpush1.msra.mxu0 0.0
  %87 = vmatprep.subr.mxu0 0.0
  %88 = vmatpush1.msra.mxu0 0.0
  %89 = vmatprep.subr.mxu0 0.0
  %90 = vmatpush1.msra.mxu0 0.0
  %91 = vmatprep.subr.mxu0 0.0
  %92 = vmatpush1.msra.mxu0 0.0
  %93 = vmatprep.subr.mxu0 0.0
  %94 = vmatpush1.msra.mxu0 0.0
  %95 = vmatprep.subr.mxu0 0.0
  %96 = vmatpush1.msra.mxu0 %v46
  %97 = vmatprep.subr.mxu0 0.0
  %98 = vmatpush1.msra.mxu0 %v45
  %99 = vmatprep.subr.mxu0 0.0
  %100 = vmatpush1.msra.mxu0 %v44
  %101 = vmatprep.subr.mxu0 0.0
  %102 = vmatpush1.msra.mxu0 %v43
  %103 = vmatprep.subr.mxu0 0.0
  %104 = vmatpush1.msra.mxu0 %v42
  %105 = vmatprep.subr.mxu0 0.0
  %106 = vmatpush1.msra.mxu0 %v41
  %107 = vmatprep.subr.mxu0 0.0
  %108 = vmatpush1.msra.mxu0 %v40
  %109 = vmatprep.subr.mxu0 0.0
  %110 = vmatpush1.msra.mxu0 %v39
  %111 = vmatprep.subr.mxu0 0.0
  %112 = vmatpush2.msra.mxu0 0.0
  %113 = vmatprep.subr.mxu0 0.0
  %114 = vmatpush2.msra.mxu0 0.0
  %115 = vmatprep.subr.mxu0 0.0
  %116 = vmatpush2.msra.mxu0 0.0
  %117 = vmatprep.subr.mxu0 0.0
  %118 = vmatpush2.msra.mxu0 0.0
  %119 = vmatprep.subr.mxu0 0.0
  %120 = vmatpush2.msra.mxu0 0.0
  %121 = vmatprep.subr.mxu0 0.0
  %122 = vmatpush2.msra.mxu0 0.0
  %123 = vmatprep.subr.mxu0 0.0
  %124 = vmatpush2.msra.mxu0 0.0
  %125 = vmatprep.subr.mxu0 0.0
  %126 = vmatpush2.msra.mxu0 0.0
  %127 = vmatprep.subr.mxu0 0.0
  %128 = vmatpush2.msra.mxu0 0.0
  %129 = vmatprep.subr.mxu0 0.0
  %130 = vmatpush2.msra.mxu0 0.0
  %131 = vmatprep.subr.mxu0 0.0
  %132 = vmatpush2.msra.mxu0 0.0
  %133 = vmatprep.subr.mxu0 0.0
  %134 = vmatpush2.msra.mxu0 0.0
  %135 = vmatprep.subr.mxu0 0.0
  %136 = vmatpush2.msra.mxu0 0.0
  %137 = vmatprep.subr.mxu0 0.0
  %138 = vmatpush2.msra.mxu0 0.0
  %139 = vmatprep.subr.mxu0 0.0
  %140 = vmatpush2.msra.mxu0 0.0
  %141 = vmatprep.subr.mxu0 0.0
  %142 = vmatpush2.msra.mxu0 0.0
  %143 = vmatprep.mubr.f32.mxu0 0.0
  %144 = vmatmul.mubr.f32.gmra.mxu0 %v56
  %v145 = vpop.f32.mrf.mxu0
  %v146 = vadd.f32 %v52, %v145
  %v147 = vpop.f32.mrf.mxu0
  %148 = vmatprep.mubr.f32.mxu0 0.0
  %149 = vmatmul.mubr.f32.gmra.mxu0 %v59
  %v150 = vpop.f32.mrf.mxu0
  %v151 = vadd.f32 %v52, %v150
  %v152 = vpop.f32.mrf.mxu0
  %153 = vmatprep.mubr.f32.mxu0 0.0
  %154 = vmatmul.mubr.f32.gmra.mxu0 %v62
  %v155 = vpop.f32.mrf.mxu0
  %v156 = vadd.f32 %v52, %v155
  %v157 = vpop.f32.mrf.mxu0
  %158 = vmatprep.mubr.f32.mxu0 0.0
  %159 = vmatmul.mubr.f32.gmra.mxu0 %v65
  %v160 = vpop.f32.mrf.mxu0
  %v161 = vadd.f32 %v52, %v160
  %v162 = vpop.f32.mrf.mxu0
  %163 = vmatprep.mubr.f32.mxu0 0.0
  %164 = vmatmul.mubr.f32.gmra.mxu0 %v68
  %v165 = vpop.f32.mrf.mxu0
  %v166 = vadd.f32 %v52, %v165
  %v167 = vpop.f32.mrf.mxu0
  %168 = vmatprep.mubr.f32.mxu0 0.0
  %169 = vmatmul.mubr.f32.gmra.mxu0 %v71
  %v170 = vpop.f32.mrf.mxu0
  %v171 = vadd.f32 %v52, %v170
  %v172 = vpop.f32.mrf.mxu0
  %173 = vmatprep.mubr.f32.mxu0 0.0
  %174 = vmatmul.mubr.f32.gmra.mxu0 %v74
  %v175 = vpop.f32.mrf.mxu0
  %v176 = vadd.f32 %v52, %v175
  %v177 = vpop.f32.mrf.mxu0
  %178 = vmatprep.mubr.f32.mxu0 0.0
  %179 = vmatmul.mubr.f32.gmra.mxu0 %v77
  %v180 = vpop.f32.mrf.mxu0
  %v181 = vadd.f32 %v52, %v180
  %v182 = vpop.f32.mrf.mxu0
  %183 = vdwg.mxu0
  %v184 = vld [vmem:[%s3] sm:$0xff]
  %v185 = vld [vmem:[%s3 + $0x8] sm:$0xff]
  %v186 = vld [vmem:[%s3 + $0x10] sm:$0xff]
  %v187 = vld [vmem:[%s3 + $0x18] sm:$0xff]
  %v188 = vld [vmem:[%s3 + $0x20] sm:$0xff]
  %v189 = vld [vmem:[%s3 + $0x28] sm:$0xff]
  %v190 = vld [vmem:[%s3 + $0x30] sm:$0xff]
  %v191 = vld [vmem:[%s3 + $0x38] sm:$0xff]
  %v192 = vld [vmem:[%s3 + $0x40] sm:$0xff]
  %v193 = vld [vmem:[%s3 + $0x48] sm:$0xff]
  %v194 = vld [vmem:[%s3 + $0x50] sm:$0xff]
  %v195 = vld [vmem:[%s3 + $0x58] sm:$0xff]
  %v196 = vld [vmem:[%s3 + $0x60] sm:$0xff]
  %v197 = vld [vmem:[%s3 + $0x68] sm:$0xff]
  %v198 = vld [vmem:[%s3 + $0x70] sm:$0xff]
  %v199 = vld [vmem:[%s3 + $0x78] sm:$0xff]
  %v200 = vld [vmem:[%s3 + $0x80] sm:$0xff]
  %v201 = vld [vmem:[%s3 + $0x88] sm:$0xff]
  %v202 = vld [vmem:[%s3 + $0x90] sm:$0xff]
  %v203 = vld [vmem:[%s3 + $0x98] sm:$0xff]
  %v204 = vld [vmem:[%s3 + $0xa0] sm:$0xff]
  %v205 = vld [vmem:[%s3 + $0xa8] sm:$0xff]
  %v206 = vld [vmem:[%s3 + $0xb0] sm:$0xff]
  %v207 = vld [vmem:[%s3 + $0xb8] sm:$0xff]
  %v208 = vld [vmem:[%s3 + $0xc0] sm:$0xff]
  %v209 = vld [vmem:[%s3 + $0xc8] sm:$0xff]
  %v210 = vld [vmem:[%s3 + $0xd0] sm:$0xff]
  %v211 = vld [vmem:[%s3 + $0xd8] sm:$0xff]
  %v212 = vld [vmem:[%s3 + $0xe0] sm:$0xff]
  %v213 = vld [vmem:[%s3 + $0xe8] sm:$0xff]
  %v214 = vld [vmem:[%s3 + $0xf0] sm:$0xff]
  %v215 = vld [vmem:[%s3 + $0xf8] sm:$0xff]
  %v216 = vld [vmem:[%s3 + $0x100] sm:$0xff]
  %v217 = vld [vmem:[%s3 + $0x108] sm:$0xff]
  %v218 = vld [vmem:[%s3 + $0x110] sm:$0xff]
  %v219 = vld [vmem:[%s3 + $0x118] sm:$0xff]
  %v220 = vld [vmem:[%s3 + $0x120] sm:$0xff]
  %v221 = vld [vmem:[%s3 + $0x128] sm:$0xff]
  %v222 = vld [vmem:[%s3 + $0x130] sm:$0xff]
  %v223 = vld [vmem:[%s3 + $0x138] sm:$0xff]
  %v224 = vld [vmem:[%s3 + $0x140] sm:$0xff]
  %v225 = vld [vmem:[%s3 + $0x148] sm:$0xff]
  %v226 = vld [vmem:[%s3 + $0x150] sm:$0xff]
  %v227 = vld [vmem:[%s3 + $0x158] sm:$0xff]
  %v228 = vld [vmem:[%s3 + $0x160] sm:$0xff]
  %v229 = vld [vmem:[%s3 + $0x168] sm:$0xff]
  %v230 = vld [vmem:[%s3 + $0x170] sm:$0xff]
  %v231 = vld [vmem:[%s3 + $0x178] sm:$0xff]
  %v232 = vld [vmem:[%s4] sm:$0x7]
  %v234 = vlaneseq
  %v235 = vshrl.u32 %v234, 7
  %v236 = vsub.s32 0, %v235
  %v237 = vrot.slane %v232, %v236
  %v238 = vlaneseq
  %v239 = vshrl.u32 %v238, 7
  %v240 = vsub.s32 1, %v239
  %v241 = vrot.slane %v232, %v240
  %v242 = vlaneseq
  %v243 = vshrl.u32 %v242, 7
  %v244 = vsub.s32 2, %v243
  %v245 = vrot.slane %v232, %v244
  %249 = vmatprep.subr.mxu0 %v230
  %250 = vmatpush1.msra.mxu0 %v229
  %251 = vmatprep.subr.mxu0 %v227
  %252 = vmatpush1.msra.mxu0 %v226
  %253 = vmatprep.subr.mxu0 %v224
  %254 = vmatpush1.msra.mxu0 %v223
  %255 = vmatprep.subr.mxu0 %v221
  %256 = vmatpush1.msra.mxu0 %v220
  %257 = vmatprep.subr.mxu0 %v218
  %258 = vmatpush1.msra.mxu0 %v217
  %259 = vmatprep.subr.mxu0 %v215
  %260 = vmatpush1.msra.mxu0 %v214
  %261 = vmatprep.subr.mxu0 %v212
  %262 = vmatpush1.msra.mxu0 %v211
  %263 = vmatprep.subr.mxu0 %v209
  %264 = vmatpush1.msra.mxu0 %v208
  %265 = vmatprep.subr.mxu0 %v206
  %266 = vmatpush1.msra.mxu0 %v205
  %267 = vmatprep.subr.mxu0 %v203
  %268 = vmatpush1.msra.mxu0 %v202
  %269 = vmatprep.subr.mxu0 %v200
  %270 = vmatpush1.msra.mxu0 %v199
  %271 = vmatprep.subr.mxu0 %v197
  %272 = vmatpush1.msra.mxu0 %v196
  %273 = vmatprep.subr.mxu0 %v194
  %274 = vmatpush1.msra.mxu0 %v193
  %275 = vmatprep.subr.mxu0 %v191
  %276 = vmatpush1.msra.mxu0 %v190
  %277 = vmatprep.subr.mxu0 %v188
  %278 = vmatpush1.msra.mxu0 %v187
  %279 = vmatprep.subr.mxu0 %v185
  %280 = vmatpush1.msra.mxu0 %v184
  %281 = vmatprep.subr.mxu0 0.0
  %282 = vmatpush2.msra.mxu0 0.0
  %283 = vmatprep.subr.mxu0 0.0
  %284 = vmatpush2.msra.mxu0 0.0
  %285 = vmatprep.subr.mxu0 0.0
  %286 = vmatpush2.msra.mxu0 0.0
  %287 = vmatprep.subr.mxu0 0.0
  %288 = vmatpush2.msra.mxu0 0.0
  %289 = vmatprep.subr.mxu0 0.0
  %290 = vmatpush2.msra.mxu0 0.0
  %291 = vmatprep.subr.mxu0 0.0
  %292 = vmatpush2.msra.mxu0 0.0
  %293 = vmatprep.subr.mxu0 0.0
  %294 = vmatpush2.msra.mxu0 0.0
  %295 = vmatprep.subr.mxu0 0.0
  %296 = vmatpush2.msra.mxu0 0.0
  %297 = vmatprep.subr.mxu0 0.0
  %298 = vmatpush2.msra.mxu0 0.0
  %299 = vmatprep.subr.mxu0 0.0
  %300 = vmatpush2.msra.mxu0 0.0
  %301 = vmatprep.subr.mxu0 0.0
  %302 = vmatpush2.msra.mxu0 0.0
  %303 = vmatprep.subr.mxu0 0.0
  %304 = vmatpush2.msra.mxu0 0.0
  %305 = vmatprep.subr.mxu0 0.0
  %306 = vmatpush2.msra.mxu0 0.0
  %307 = vmatprep.subr.mxu0 0.0
  %308 = vmatpush2.msra.mxu0 0.0
  %309 = vmatprep.subr.mxu0 0.0
  %310 = vmatpush2.msra.mxu0 0.0
  %311 = vmatprep.subr.mxu0 0.0
  %312 = vmatpush2.msra.mxu0 0.0
  %313 = vmatprep.mubr.f32.mxu0 0.0
  %314 = vmatmul.mubr.f32.gmra.mxu0 %v146
  %v315 = vpop.f32.mrf.mxu0
  %v316 = vadd.f32 %v237, %v315
  %v317 = vpop.f32.mrf.mxu0
  %v318 = vadd.f32 %v241, %v317
  %319 = vmatprep.mubr.f32.mxu0 0.0
  %320 = vmatmul.mubr.f32.gmra.mxu0 %v151
  %v321 = vpop.f32.mrf.mxu0
  %v322 = vadd.f32 %v237, %v321
  %v323 = vpop.f32.mrf.mxu0
  %v324 = vadd.f32 %v241, %v323
  %325 = vmatprep.mubr.f32.mxu0 0.0
  %326 = vmatmul.mubr.f32.gmra.mxu0 %v156
  %v327 = vpop.f32.mrf.mxu0
  %v328 = vadd.f32 %v237, %v327
  %v329 = vpop.f32.mrf.mxu0
  %v330 = vadd.f32 %v241, %v329
  %331 = vmatprep.mubr.f32.mxu0 0.0
  %332 = vmatmul.mubr.f32.gmra.mxu0 %v161
  %v333 = vpop.f32.mrf.mxu0
  %v334 = vadd.f32 %v237, %v333
  %v335 = vpop.f32.mrf.mxu0
  %v336 = vadd.f32 %v241, %v335
  %337 = vmatprep.mubr.f32.mxu0 0.0
  %338 = vmatmul.mubr.f32.gmra.mxu0 %v166
  %v339 = vpop.f32.mrf.mxu0
  %v340 = vadd.f32 %v237, %v339
  %v341 = vpop.f32.mrf.mxu0
  %v342 = vadd.f32 %v241, %v341
  %343 = vmatprep.mubr.f32.mxu0 0.0
  %344 = vmatmul.mubr.f32.gmra.mxu0 %v171
  %v345 = vpop.f32.mrf.mxu0
  %v346 = vadd.f32 %v237, %v345
  %v347 = vpop.f32.mrf.mxu0
  %v348 = vadd.f32 %v241, %v347
  %349 = vmatprep.mubr.f32.mxu0 0.0
  %350 = vmatmul.mubr.f32.gmra.mxu0 %v176
  %v351 = vpop.f32.mrf.mxu0
  %v352 = vadd.f32 %v237, %v351
  %v353 = vpop.f32.mrf.mxu0
  %v354 = vadd.f32 %v241, %v353
  %355 = vmatprep.mubr.f32.mxu0 0.0
  %356 = vmatmul.mubr.f32.gmra.mxu0 %v181
  %v357 = vpop.f32.mrf.mxu0
  %v358 = vadd.f32 %v237, %v357
  %v359 = vpop.f32.mrf.mxu0
  %v360 = vadd.f32 %v241, %v359
  %361 = vdwg.mxu0
  %362 = vmatprep.subr.mxu0 0.0
  %363 = vmatpush1.msra.mxu0 %v231
  %364 = vmatprep.subr.mxu0 0.0
  %365 = vmatpush1.msra.mxu0 %v228
  %366 = vmatprep.subr.mxu0 0.0
  %367 = vmatpush1.msra.mxu0 %v225
  %368 = vmatprep.subr.mxu0 0.0
  %369 = vmatpush1.msra.mxu0 %v222
  %370 = vmatprep.subr.mxu0 0.0
  %371 = vmatpush1.msra.mxu0 %v219
  %372 = vmatprep.subr.mxu0 0.0
  %373 = vmatpush1.msra.mxu0 %v216
  %374 = vmatprep.subr.mxu0 0.0
  %375 = vmatpush1.msra.mxu0 %v213
  %376 = vmatprep.subr.mxu0 0.0
  %377 = vmatpush1.msra.mxu0 %v210
  %378 = vmatprep.subr.mxu0 0.0
  %379 = vmatpush1.msra.mxu0 %v207
  %380 = vmatprep.subr.mxu0 0.0
  %381 = vmatpush1.msra.mxu0 %v204
  %382 = vmatprep.subr.mxu0 0.0
  %383 = vmatpush1.msra.mxu0 %v201
  %384 = vmatprep.subr.mxu0 0.0
  %385 = vmatpush1.msra.mxu0 %v198
  %386 = vmatprep.subr.mxu0 0.0
  %387 = vmatpush1.msra.mxu0 %v195
  %388 = vmatprep.subr.mxu0 0.0
  %389 = vmatpush1.msra.mxu0 %v192
  %390 = vmatprep.subr.mxu0 0.0
  %391 = vmatpush1.msra.mxu0 %v189
  %392 = vmatprep.subr.mxu0 0.0
  %393 = vmatpush1.msra.mxu0 %v186
  %394 = vmatprep.subr.mxu0 0.0
  %395 = vmatpush2.msra.mxu0 0.0
  %396 = vmatprep.subr.mxu0 0.0
  %397 = vmatpush2.msra.mxu0 0.0
  %398 = vmatprep.subr.mxu0 0.0
  %399 = vmatpush2.msra.mxu0 0.0
  %400 = vmatprep.subr.mxu0 0.0
  %401 = vmatpush2.msra.mxu0 0.0
  %402 = vmatprep.subr.mxu0 0.0
  %403 = vmatpush2.msra.mxu0 0.0
  %404 = vmatprep.subr.mxu0 0.0
  %405 = vmatpush2.msra.mxu0 0.0
  %406 = vmatprep.subr.mxu0 0.0
  %407 = vmatpush2.msra.mxu0 0.0
  %408 = vmatprep.subr.mxu0 0.0
  %409 = vmatpush2.msra.mxu0 0.0
  %410 = vmatprep.subr.mxu0 0.0
  %411 = vmatpush2.msra.mxu0 0.0
  %412 = vmatprep.subr.mxu0 0.0
  %413 = vmatpush2.msra.mxu0 0.0
  %414 = vmatprep.subr.mxu0 0.0
  %415 = vmatpush2.msra.mxu0 0.0
  %416 = vmatprep.subr.mxu0 0.0
  %417 = vmatpush2.msra.mxu0 0.0
  %418 = vmatprep.subr.mxu0 0.0
  %419 = vmatpush2.msra.mxu0 0.0
  %420 = vmatprep.subr.mxu0 0.0
  %421 = vmatpush2.msra.mxu0 0.0
  %422 = vmatprep.subr.mxu0 0.0
  %423 = vmatpush2.msra.mxu0 0.0
  %424 = vmatprep.subr.mxu0 0.0
  %425 = vmatpush2.msra.mxu0 0.0
  %426 = vmatprep.mubr.f32.mxu0 0.0
  %427 = vmatmul.mubr.f32.gmra.mxu0 %v146
  %v428 = vpop.f32.mrf.mxu0
  %v429 = vadd.f32 %v245, %v428
  %v430 = vpop.f32.mrf.mxu0
  %431 = vmatprep.mubr.f32.mxu0 0.0
  %432 = vmatmul.mubr.f32.gmra.mxu0 %v151
  %v433 = vpop.f32.mrf.mxu0
  %v434 = vadd.f32 %v245, %v433
  %v435 = vpop.f32.mrf.mxu0
  %436 = vmatprep.mubr.f32.mxu0 0.0
  %437 = vmatmul.mubr.f32.gmra.mxu0 %v156
  %v438 = vpop.f32.mrf.mxu0
  %v439 = vadd.f32 %v245, %v438
  %v440 = vpop.f32.mrf.mxu0
  %441 = vmatprep.mubr.f32.mxu0 0.0
  %442 = vmatmul.mubr.f32.gmra.mxu0 %v161
  %v443 = vpop.f32.mrf.mxu0
  %v444 = vadd.f32 %v245, %v443
  %v445 = vpop.f32.mrf.mxu0
  %446 = vmatprep.mubr.f32.mxu0 0.0
  %447 = vmatmul.mubr.f32.gmra.mxu0 %v166
  %v448 = vpop.f32.mrf.mxu0
  %v449 = vadd.f32 %v245, %v448
  %v450 = vpop.f32.mrf.mxu0
  %451 = vmatprep.mubr.f32.mxu0 0.0
  %452 = vmatmul.mubr.f32.gmra.mxu0 %v171
  %v453 = vpop.f32.mrf.mxu0
  %v454 = vadd.f32 %v245, %v453
  %v455 = vpop.f32.mrf.mxu0
  %456 = vmatprep.mubr.f32.mxu0 0.0
  %457 = vmatmul.mubr.f32.gmra.mxu0 %v176
  %v458 = vpop.f32.mrf.mxu0
  %v459 = vadd.f32 %v245, %v458
  %v460 = vpop.f32.mrf.mxu0
  %461 = vmatprep.mubr.f32.mxu0 0.0
  %462 = vmatmul.mubr.f32.gmra.mxu0 %v181
  %v463 = vpop.f32.mrf.mxu0
  %v464 = vadd.f32 %v245, %v463
  %v465 = vpop.f32.mrf.mxu0
  %466 = vdwg.mxu0
  %467 = vst [vmem:[#allocation2] sm:$0xff] %v316
  %468 = vst [vmem:[#allocation2 + $0x8] sm:$0xff] %v318
  %469 = vst [vmem:[#allocation2 + $0x10] sm:$0xff] %v429
  %470 = vst [vmem:[#allocation2 + $0x18] sm:$0xff] %v322
  %471 = vst [vmem:[#allocation2 + $0x20] sm:$0xff] %v324
  %472 = vst [vmem:[#allocation2 + $0x28] sm:$0xff] %v434
  %473 = vst [vmem:[#allocation2 + $0x30] sm:$0xff] %v328
  %474 = vst [vmem:[#allocation2 + $0x38] sm:$0xff] %v330
  %475 = vst [vmem:[#allocation2 + $0x40] sm:$0xff] %v439
  %476 = vst [vmem:[#allocation2 + $0x48] sm:$0xff] %v334
  %477 = vst [vmem:[#allocation2 + $0x50] sm:$0xff] %v336
  %478 = vst [vmem:[#allocation2 + $0x58] sm:$0xff] %v444
  %479 = vst [vmem:[#allocation2 + $0x60] sm:$0xff] %v340
  %480 = vst [vmem:[#allocation2 + $0x68] sm:$0xff] %v342
  %481 = vst [vmem:[#allocation2 + $0x70] sm:$0xff] %v449
  %482 = vst [vmem:[#allocation2 + $0x78] sm:$0xff] %v346
  %483 = vst [vmem:[#allocation2 + $0x80] sm:$0xff] %v348
  %484 = vst [vmem:[#allocation2 + $0x88] sm:$0xff] %v454
  %485 = vst [vmem:[#allocation2 + $0x90] sm:$0xff] %v352
  %486 = vst [vmem:[#allocation2 + $0x98] sm:$0xff] %v354
  %487 = vst [vmem:[#allocation2 + $0xa0] sm:$0xff] %v459
  %488 = vst [vmem:[#allocation2 + $0xa8] sm:$0xff] %v358
  %489 = vst [vmem:[#allocation2 + $0xb0] sm:$0xff] %v360
  %490 = vst [vmem:[#allocation2 + $0xb8] sm:$0xff] %v464
  %v491 = vld [vmem:[%s6] sm:$0x7]
  %v493 = vlaneseq
  %v494 = vshrl.u32 %v493, 7
  %v495 = vsub.s32 0, %v494
  %v496 = vrot.slane %v491, %v495
  %v497 = vlaneseq
  %v498 = vshrl.u32 %v497, 7
  %v499 = vsub.s32 1, %v498
  %v500 = vrot.slane %v491, %v499
  %v501 = vlaneseq
  %v502 = vshrl.u32 %v501, 7
  %v503 = vsub.s32 2, %v502
  %v504 = vrot.slane %v491, %v503
  %v508 = vld [vmem:[#allocation3] sm:$0xff]
  %v509 = vld [vmem:[%s5] sm:$0xff]
  %v510 = vld [vmem:[%s5 + $0x8] sm:$0xff]
  %v511 = vld [vmem:[%s5 + $0x10] sm:$0xff]
  %v512 = vld [vmem:[%s5 + $0x18] sm:$0xff]
  %v513 = vld [vmem:[%s5 + $0x20] sm:$0xff]
  %v514 = vld [vmem:[%s5 + $0x28] sm:$0xff]
  %v515 = vld [vmem:[%s5 + $0x30] sm:$0xff]
  %v516 = vld [vmem:[%s5 + $0x38] sm:$0xff]
  %v517 = vld [vmem:[%s5 + $0x40] sm:$0xff]
  %v518 = vld [vmem:[%s5 + $0x48] sm:$0xff]
  %v519 = vld [vmem:[%s5 + $0x50] sm:$0xff]
  %v520 = vld [vmem:[%s5 + $0x58] sm:$0xff]
  %v521 = vld [vmem:[%s5 + $0x60] sm:$0xff]
  %v522 = vld [vmem:[%s5 + $0x68] sm:$0xff]
  %v523 = vld [vmem:[%s5 + $0x70] sm:$0xff]
  %v524 = vld [vmem:[%s5 + $0x78] sm:$0xff]
  %v525 = vld [vmem:[%s5 + $0x80] sm:$0xff]
  %v526 = vld [vmem:[%s5 + $0x88] sm:$0xff]
  %v527 = vld [vmem:[%s5 + $0x90] sm:$0xff]
  %v528 = vld [vmem:[%s5 + $0x98] sm:$0xff]
  %v529 = vld [vmem:[%s5 + $0xa0] sm:$0xff]
  %v530 = vld [vmem:[%s5 + $0xa8] sm:$0xff]
  %v531 = vld [vmem:[%s5 + $0xb0] sm:$0xff]
  %v532 = vld [vmem:[%s5 + $0xb8] sm:$0xff]
  %v533 = vld [vmem:[%s5 + $0xc0] sm:$0xff]
  %v534 = vld [vmem:[%s5 + $0xc8] sm:$0xff]
  %v535 = vld [vmem:[%s5 + $0xd0] sm:$0xff]
  %v536 = vld [vmem:[%s5 + $0xd8] sm:$0xff]
  %v537 = vld [vmem:[%s5 + $0xe0] sm:$0xff]
  %v538 = vld [vmem:[%s5 + $0xe8] sm:$0xff]
  %v539 = vld [vmem:[%s5 + $0xf0] sm:$0xff]
  %v540 = vld [vmem:[%s5 + $0xf8] sm:$0xff]
  %v541 = vld [vmem:[%s5 + $0x100] sm:$0xff]
  %v542 = vld [vmem:[%s5 + $0x108] sm:$0xff]
  %v543 = vld [vmem:[%s5 + $0x110] sm:$0xff]
  %v544 = vld [vmem:[%s5 + $0x118] sm:$0xff]
  %v545 = vld [vmem:[%s5 + $0x120] sm:$0xff]
  %v546 = vld [vmem:[%s5 + $0x128] sm:$0xff]
  %v547 = vld [vmem:[%s5 + $0x130] sm:$0xff]
  %v548 = vld [vmem:[%s5 + $0x138] sm:$0xff]
  %v549 = vld [vmem:[%s5 + $0x140] sm:$0xff]
  %v550 = vld [vmem:[%s5 + $0x148] sm:$0xff]
  %v551 = vld [vmem:[%s5 + $0x150] sm:$0xff]
  %v552 = vld [vmem:[%s5 + $0x158] sm:$0xff]
  %v553 = vld [vmem:[%s5 + $0x160] sm:$0xff]
  %v554 = vld [vmem:[%s5 + $0x168] sm:$0xff]
  %v555 = vld [vmem:[%s5 + $0x170] sm:$0xff]
  %v556 = vld [vmem:[%s5 + $0x178] sm:$0xff]
  %557 = vmatprep.subr.mxu0 %v555
  %558 = vmatpush1.msra.mxu0 %v554
  %559 = vmatprep.subr.mxu0 %v552
  %560 = vmatpush1.msra.mxu0 %v551
  %561 = vmatprep.subr.mxu0 %v549
  %562 = vmatpush1.msra.mxu0 %v548
  %563 = vmatprep.subr.mxu0 %v546
  %564 = vmatpush1.msra.mxu0 %v545
  %565 = vmatprep.subr.mxu0 %v543
  %566 = vmatpush1.msra.mxu0 %v542
  %567 = vmatprep.subr.mxu0 %v540
  %568 = vmatpush1.msra.mxu0 %v539
  %569 = vmatprep.subr.mxu0 %v537
  %570 = vmatpush1.msra.mxu0 %v536
  %571 = vmatprep.subr.mxu0 %v534
  %572 = vmatpush1.msra.mxu0 %v533
  %573 = vmatprep.subr.mxu0 %v531
  %574 = vmatpush1.msra.mxu0 %v530
  %575 = vmatprep.subr.mxu0 %v528
  %576 = vmatpush1.msra.mxu0 %v527
  %577 = vmatprep.subr.mxu0 %v525
  %578 = vmatpush1.msra.mxu0 %v524
  %579 = vmatprep.subr.mxu0 %v522
  %580 = vmatpush1.msra.mxu0 %v521
  %581 = vmatprep.subr.mxu0 %v519
  %582 = vmatpush1.msra.mxu0 %v518
  %583 = vmatprep.subr.mxu0 %v516
  %584 = vmatpush1.msra.mxu0 %v515
  %585 = vmatprep.subr.mxu0 %v513
  %586 = vmatpush1.msra.mxu0 %v512
  %587 = vmatprep.subr.mxu0 %v510
  %588 = vmatpush1.msra.mxu0 %v509
  %589 = vmatprep.subr.mxu0 0.0
  %590 = vmatpush2.msra.mxu0 0.0
  %591 = vmatprep.subr.mxu0 0.0
  %592 = vmatpush2.msra.mxu0 0.0
  %593 = vmatprep.subr.mxu0 0.0
  %594 = vmatpush2.msra.mxu0 0.0
  %595 = vmatprep.subr.mxu0 0.0
  %596 = vmatpush2.msra.mxu0 0.0
  %597 = vmatprep.subr.mxu0 0.0
  %598 = vmatpush2.msra.mxu0 0.0
  %599 = vmatprep.subr.mxu0 0.0
  %600 = vmatpush2.msra.mxu0 0.0
  %601 = vmatprep.subr.mxu0 0.0
  %602 = vmatpush2.msra.mxu0 0.0
  %603 = vmatprep.subr.mxu0 0.0
  %604 = vmatpush2.msra.mxu0 0.0
  %605 = vmatprep.subr.mxu0 0.0
  %606 = vmatpush2.msra.mxu0 0.0
  %607 = vmatprep.subr.mxu0 0.0
  %608 = vmatpush2.msra.mxu0 0.0
  %609 = vmatprep.subr.mxu0 0.0
  %610 = vmatpush2.msra.mxu0 0.0
  %611 = vmatprep.subr.mxu0 0.0
  %612 = vmatpush2.msra.mxu0 0.0
  %613 = vmatprep.subr.mxu0 0.0
  %614 = vmatpush2.msra.mxu0 0.0
  %615 = vmatprep.subr.mxu0 0.0
  %616 = vmatpush2.msra.mxu0 0.0
  %617 = vmatprep.subr.mxu0 0.0
  %618 = vmatpush2.msra.mxu0 0.0
  %619 = vmatprep.subr.mxu0 0.0
  %620 = vmatpush2.msra.mxu0 0.0
  %621 = vmatprep.mubr.f32.mxu0 0.0
  %622 = vmatmul.mubr.f32.gmra.mxu0 %v508
  %v623 = vpop.f32.mrf.mxu0
  %v624 = vadd.f32 %v496, %v623
  %v625 = vpop.f32.mrf.mxu0
  %v626 = vadd.f32 %v500, %v625
  %627 = vdwg.mxu0
  %628 = vmatprep.subr.mxu0 0.0
  %629 = vmatpush1.msra.mxu0 %v556
  %630 = vmatprep.subr.mxu0 0.0
  %631 = vmatpush1.msra.mxu0 %v553
  %632 = vmatprep.subr.mxu0 0.0
  %633 = vmatpush1.msra.mxu0 %v550
  %634 = vmatprep.subr.mxu0 0.0
  %635 = vmatpush1.msra.mxu0 %v547
  %636 = vmatprep.subr.mxu0 0.0
  %637 = vmatpush1.msra.mxu0 %v544
  %638 = vmatprep.subr.mxu0 0.0
  %639 = vmatpush1.msra.mxu0 %v541
  %640 = vmatprep.subr.mxu0 0.0
  %641 = vmatpush1.msra.mxu0 %v538
  %642 = vmatprep.subr.mxu0 0.0
  %643 = vmatpush1.msra.mxu0 %v535
  %644 = vmatprep.subr.mxu0 0.0
  %645 = vmatpush1.msra.mxu0 %v532
  %646 = vmatprep.subr.mxu0 0.0
  %647 = vmatpush1.msra.mxu0 %v529
  %648 = vmatprep.subr.mxu0 0.0
  %649 = vmatpush1.msra.mxu0 %v526
  %650 = vmatprep.subr.mxu0 0.0
  %651 = vmatpush1.msra.mxu0 %v523
  %652 = vmatprep.subr.mxu0 0.0
  %653 = vmatpush1.msra.mxu0 %v520
  %654 = vmatprep.subr.mxu0 0.0
  %655 = vmatpush1.msra.mxu0 %v517
  %656 = vmatprep.subr.mxu0 0.0
  %657 = vmatpush1.msra.mxu0 %v514
  %658 = vmatprep.subr.mxu0 0.0
  %659 = vmatpush1.msra.mxu0 %v511
  %660 = vmatprep.subr.mxu0 0.0
  %661 = vmatpush2.msra.mxu0 0.0
  %662 = vmatprep.subr.mxu0 0.0
  %663 = vmatpush2.msra.mxu0 0.0
  %664 = vmatprep.subr.mxu0 0.0
  %665 = vmatpush2.msra.mxu0 0.0
  %666 = vmatprep.subr.mxu0 0.0
  %667 = vmatpush2.msra.mxu0 0.0
  %668 = vmatprep.subr.mxu0 0.0
  %669 = vmatpush2.msra.mxu0 0.0
  %670 = vmatprep.subr.mxu0 0.0
  %671 = vmatpush2.msra.mxu0 0.0
  %672 = vmatprep.subr.mxu0 0.0
  %673 = vmatpush2.msra.mxu0 0.0
  %674 = vmatprep.subr.mxu0 0.0
  %675 = vmatpush2.msra.mxu0 0.0
  %676 = vmatprep.subr.mxu0 0.0
  %677 = vmatpush2.msra.mxu0 0.0
  %678 = vmatprep.subr.mxu0 0.0
  %679 = vmatpush2.msra.mxu0 0.0
  %680 = vmatprep.subr.mxu0 0.0
  %681 = vmatpush2.msra.mxu0 0.0
  %682 = vmatprep.subr.mxu0 0.0
  %683 = vmatpush2.msra.mxu0 0.0
  %684 = vmatprep.subr.mxu0 0.0
  %685 = vmatpush2.msra.mxu0 0.0
  %686 = vmatprep.subr.mxu0 0.0
  %687 = vmatpush2.msra.mxu0 0.0
  %688 = vmatprep.subr.mxu0 0.0
  %689 = vmatpush2.msra.mxu0 0.0
  %690 = vmatprep.subr.mxu0 0.0
  %691 = vmatpush2.msra.mxu0 0.0
  %692 = vmatprep.mubr.f32.mxu0 0.0
  %693 = vmatmul.mubr.f32.gmra.mxu0 %v508
  %v694 = vpop.f32.mrf.mxu0
  %v695 = vadd.f32 %v504, %v694
  %v696 = vpop.f32.mrf.mxu0
  %697 = vdwg.mxu0
  %v698 = vld [vmem:[#allocation2] sm:$0xff]
  %v699 = vld [vmem:[#allocation2 + $0x8] sm:$0xff]
  %v700 = vld [vmem:[#allocation2 + $0x10] sm:$0xff]
  %v701 = vadd.f32 %v698, %v624
  %v702 = vxor.u32 %v701, 2147483648
  %v703 = vmul.f32 %v702, 1.442695
  %v704 = vpow.pop %v703
  %v705 = vadd.f32 %v704, 1.0
  %v706 = vrcp.pop %v705
  %v707 = vmul.f32 1.0, %v706
  %v708 = vadd.f32 %v699, %v626
  %v709 = vxor.u32 %v708, 2147483648
  %v710 = vmul.f32 %v709, 1.442695
  %v711 = vpow.pop %v710
  %v712 = vadd.f32 %v711, 1.0
  %v713 = vrcp.pop %v712
  %v714 = vmul.f32 1.0, %v713
  %v715 = vmul.f32 %v707, %v695
  %v716 = vadd.f32 %v700, %v715
  %v717 = vtanh.pop %v716
  %v718 = vsub.f32 1.0, %v714
  %v719 = vmul.f32 %v718, %v717
  %v720 = vmul.f32 %v714, %v508
  %v721 = vadd.f32 %v719, %v720
  %722 = vst [vmem:[%s7] sm:$0xff] %v721
  %v723 = vld [vmem:[%s5] sm:$0xff]
  %v724 = vld [vmem:[%s5 + $0x8] sm:$0xff]
  %v725 = vld [vmem:[%s5 + $0x10] sm:$0xff]
  %v726 = vld [vmem:[%s5 + $0x18] sm:$0xff]
  %v727 = vld [vmem:[%s5 + $0x20] sm:$0xff]
  %v728 = vld [vmem:[%s5 + $0x28] sm:$0xff]
  %v729 = vld [vmem:[%s5 + $0x30] sm:$0xff]
  %v730 = vld [vmem:[%s5 + $0x38] sm:$0xff]
  %v731 = vld [vmem:[%s5 + $0x40] sm:$0xff]
  %v732 = vld [vmem:[%s5 + $0x48] sm:$0xff]
  %v733 = vld [vmem:[%s5 + $0x50] sm:$0xff]
  %v734 = vld [vmem:[%s5 + $0x58] sm:$0xff]
  %v735 = vld [vmem:[%s5 + $0x60] sm:$0xff]
  %v736 = vld [vmem:[%s5 + $0x68] sm:$0xff]
  %v737 = vld [vmem:[%s5 + $0x70] sm:$0xff]
  %v738 = vld [vmem:[%s5 + $0x78] sm:$0xff]
  %v739 = vld [vmem:[%s5 + $0x80] sm:$0xff]
  %v740 = vld [vmem:[%s5 + $0x88] sm:$0xff]
  %v741 = vld [vmem:[%s5 + $0x90] sm:$0xff]
  %v742 = vld [vmem:[%s5 + $0x98] sm:$0xff]
  %v743 = vld [vmem:[%s5 + $0xa0] sm:$0xff]
  %v744 = vld [vmem:[%s5 + $0xa8] sm:$0xff]
  %v745 = vld [vmem:[%s5 + $0xb0] sm:$0xff]
  %v746 = vld [vmem:[%s5 + $0xb8] sm:$0xff]
  %v747 = vld [vmem:[%s5 + $0xc0] sm:$0xff]
  %v748 = vld [vmem:[%s5 + $0xc8] sm:$0xff]
  %v749 = vld [vmem:[%s5 + $0xd0] sm:$0xff]
  %v750 = vld [vmem:[%s5 + $0xd8] sm:$0xff]
  %v751 = vld [vmem:[%s5 + $0xe0] sm:$0xff]
  %v752 = vld [vmem:[%s5 + $0xe8] sm:$0xff]
  %v753 = vld [vmem:[%s5 + $0xf0] sm:$0xff]
  %v754 = vld [vmem:[%s5 + $0xf8] sm:$0xff]
  %v755 = vld [vmem:[%s5 + $0x100] sm:$0xff]
  %v756 = vld [vmem:[%s5 + $0x108] sm:$0xff]
  %v757 = vld [vmem:[%s5 + $0x110] sm:$0xff]
  %v758 = vld [vmem:[%s5 + $0x118] sm:$0xff]
  %v759 = vld [vmem:[%s5 + $0x120] sm:$0xff]
  %v760 = vld [vmem:[%s5 + $0x128] sm:$0xff]
  %v761 = vld [vmem:[%s5 + $0x130] sm:$0xff]
  %v762 = vld [vmem:[%s5 + $0x138] sm:$0xff]
  %v763 = vld [vmem:[%s5 + $0x140] sm:$0xff]
  %v764 = vld [vmem:[%s5 + $0x148] sm:$0xff]
  %v765 = vld [vmem:[%s5 + $0x150] sm:$0xff]
  %v766 = vld [vmem:[%s5 + $0x158] sm:$0xff]
  %v767 = vld [vmem:[%s5 + $0x160] sm:$0xff]
  %v768 = vld [vmem:[%s5 + $0x168] sm:$0xff]
  %v769 = vld [vmem:[%s5 + $0x170] sm:$0xff]
  %v770 = vld [vmem:[%s5 + $0x178] sm:$0xff]
  %771 = vmatprep.subr.mxu0 %v769
  %772 = vmatpush1.msra.mxu0 %v768
  %773 = vmatprep.subr.mxu0 %v766
  %774 = vmatpush1.msra.mxu0 %v765
  %775 = vmatprep.subr.mxu0 %v763
  %776 = vmatpush1.msra.mxu0 %v762
  %777 = vmatprep.subr.mxu0 %v760
  %778 = vmatpush1.msra.mxu0 %v759
  %779 = vmatprep.subr.mxu0 %v757
  %780 = vmatpush1.msra.mxu0 %v756
  %781 = vmatprep.subr.mxu0 %v754
  %782 = vmatpush1.msra.mxu0 %v753
  %783 = vmatprep.subr.mxu0 %v751
  %784 = vmatpush1.msra.mxu0 %v750
  %785 = vmatprep.subr.mxu0 %v748
  %786 = vmatpush1.msra.mxu0 %v747
  %787 = vmatprep.subr.mxu0 %v745
  %788 = vmatpush1.msra.mxu0 %v744
  %789 = vmatprep.subr.mxu0 %v742
  %790 = vmatpush1.msra.mxu0 %v741
  %791 = vmatprep.subr.mxu0 %v739
  %792 = vmatpush1.msra.mxu0 %v738
  %793 = vmatprep.subr.mxu0 %v736
  %794 = vmatpush1.msra.mxu0 %v735
  %795 = vmatprep.subr.mxu0 %v733
  %796 = vmatpush1.msra.mxu0 %v732
  %797 = vmatprep.subr.mxu0 %v730
  %798 = vmatpush1.msra.mxu0 %v729
  %799 = vmatprep.subr.mxu0 %v727
  %800 = vmatpush1.msra.mxu0 %v726
  %801 = vmatprep.subr.mxu0 %v724
  %802 = vmatpush1.msra.mxu0 %v723
  %803 = vmatprep.subr.mxu0 0.0
  %804 = vmatpush2.msra.mxu0 0.0
  %805 = vmatprep.subr.mxu0 0.0
  %806 = vmatpush2.msra.mxu0 0.0
  %807 = vmatprep.subr.mxu0 0.0
  %808 = vmatpush2.msra.mxu0 0.0
  %809 = vmatprep.subr.mxu0 0.0
  %810 = vmatpush2.msra.mxu0 0.0
  %811 = vmatprep.subr.mxu0 0.0
  %812 = vmatpush2.msra.mxu0 0.0
  %813 = vmatprep.subr.mxu0 0.0
  %814 = vmatpush2.msra.mxu0 0.0
  %815 = vmatprep.subr.mxu0 0.0
  %816 = vmatpush2.msra.mxu0 0.0
  %817 = vmatprep.subr.mxu0 0.0
  %818 = vmatpush2.msra.mxu0 0.0
  %819 = vmatprep.subr.mxu0 0.0
  %820 = vmatpush2.msra.mxu0 0.0
  %821 = vmatprep.subr.mxu0 0.0
  %822 = vmatpush2.msra.mxu0 0.0
  %823 = vmatprep.subr.mxu0 0.0
  %824 = vmatpush2.msra.mxu0 0.0
  %825 = vmatprep.subr.mxu0 0.0
  %826 = vmatpush2.msra.mxu0 0.0
  %827 = vmatprep.subr.mxu0 0.0
  %828 = vmatpush2.msra.mxu0 0.0
  %829 = vmatprep.subr.mxu0 0.0
  %830 = vmatpush2.msra.mxu0 0.0
  %831 = vmatprep.subr.mxu0 0.0
  %832 = vmatpush2.msra.mxu0 0.0
  %833 = vmatprep.subr.mxu0 0.0
  %834 = vmatpush2.msra.mxu0 0.0
  %835 = vmatprep.mubr.f32.mxu0 0.0
  %836 = vmatmul.mubr.f32.gmra.mxu0 %v721
  %v837 = vpop.f32.mrf.mxu0
  %v838 = vadd.f32 %v496, %v837
  %v839 = vpop.f32.mrf.mxu0
  %v840 = vadd.f32 %v500, %v839
  %841 = vdwg.mxu0
  %842 = vmatprep.subr.mxu0 0.0
  %843 = vmatpush1.msra.mxu0 %v770
  %844 = vmatprep.subr.mxu0 0.0
  %845 = vmatpush1.msra.mxu0 %v767
  %846 = vmatprep.subr.mxu0 0.0
  %847 = vmatpush1.msra.mxu0 %v764
  %848 = vmatprep.subr.mxu0 0.0
  %849 = vmatpush1.msra.mxu0 %v761
  %850 = vmatprep.subr.mxu0 0.0
  %851 = vmatpush1.msra.mxu0 %v758
  %852 = vmatprep.subr.mxu0 0.0
  %853 = vmatpush1.msra.mxu0 %v755
  %854 = vmatprep.subr.mxu0 0.0
  %855 = vmatpush1.msra.mxu0 %v752
  %856 = vmatprep.subr.mxu0 0.0
  %857 = vmatpush1.msra.mxu0 %v749
  %858 = vmatprep.subr.mxu0 0.0
  %859 = vmatpush1.msra.mxu0 %v746
  %860 = vmatprep.subr.mxu0 0.0
  %861 = vmatpush1.msra.mxu0 %v743
  %862 = vmatprep.subr.mxu0 0.0
  %863 = vmatpush1.msra.mxu0 %v740
  %864 = vmatprep.subr.mxu0 0.0
  %865 = vmatpush1.msra.mxu0 %v737
  %866 = vmatprep.subr.mxu0 0.0
  %867 = vmatpush1.msra.mxu0 %v734
  %868 = vmatprep.subr.mxu0 0.0
  %869 = vmatpush1.msra.mxu0 %v731
  %870 = vmatprep.subr.mxu0 0.0
  %871 = vmatpush1.msra.mxu0 %v728
  %872 = vmatprep.subr.mxu0 0.0
  %873 = vmatpush1.msra.mxu0 %v725
  %874 = vmatprep.subr.mxu0 0.0
  %875 = vmatpush2.msra.mxu0 0.0
  %876 = vmatprep.subr.mxu0 0.0
  %877 = vmatpush2.msra.mxu0 0.0
  %878 = vmatprep.subr.mxu0 0.0
  %879 = vmatpush2.msra.mxu0 0.0
  %880 = vmatprep.subr.mxu0 0.0
  %881 = vmatpush2.msra.mxu0 0.0
  %882 = vmatprep.subr.mxu0 0.0
  %883 = vmatpush2.msra.mxu0 0.0
  %884 = vmatprep.subr.mxu0 0.0
  %885 = vmatpush2.msra.mxu0 0.0
  %886 = vmatprep.subr.mxu0 0.0
  %887 = vmatpush2.msra.mxu0 0.0
  %888 = vmatprep.subr.mxu0 0.0
  %889 = vmatpush2.msra.mxu0 0.0
  %890 = vmatprep.subr.mxu0 0.0
  %891 = vmatpush2.msra.mxu0 0.0
  %892 = vmatprep.subr.mxu0 0.0
  %893 = vmatpush2.msra.mxu0 0.0
  %894 = vmatprep.subr.mxu0 0.0
  %895 = vmatpush2.msra.mxu0 0.0
  %896 = vmatprep.subr.mxu0 0.0
  %897 = vmatpush2.msra.mxu0 0.0
  %898 = vmatprep.subr.mxu0 0.0
  %899 = vmatpush2.msra.mxu0 0.0
  %900 = vmatprep.subr.mxu0 0.0
  %901 = vmatpush2.msra.mxu0 0.0
  %902 = vmatprep.subr.mxu0 0.0
  %903 = vmatpush2.msra.mxu0 0.0
  %904 = vmatprep.subr.mxu0 0.0
  %905 = vmatpush2.msra.mxu0 0.0
  %906 = vmatprep.mubr.f32.mxu0 0.0
  %907 = vmatmul.mubr.f32.gmra.mxu0 %v721
  %v908 = vpop.f32.mrf.mxu0
  %v909 = vadd.f32 %v504, %v908
  %v910 = vpop.f32.mrf.mxu0
  %911 = vdwg.mxu0
  %v912 = vld [vmem:[#allocation2 + $0x18] sm:$0xff]
  %v913 = vld [vmem:[#allocation2 + $0x20] sm:$0xff]
  %v914 = vld [vmem:[#allocation2 + $0x28] sm:$0xff]
  %v915 = vadd.f32 %v912, %v838
  %v916 = vxor.u32 %v915, 2147483648
  %v917 = vmul.f32 %v916, 1.442695
  %v918 = vpow.pop %v917
  %v919 = vadd.f32 %v918, 1.0
  %v920 = vrcp.pop %v919
  %v921 = vmul.f32 1.0, %v920
  %v922 = vadd.f32 %v913, %v840
  %v923 = vxor.u32 %v922, 2147483648
  %v924 = vmul.f32 %v923, 1.442695
  %v925 = vpow.pop %v924
  %v926 = vadd.f32 %v925, 1.0
  %v927 = vrcp.pop %v926
  %v928 = vmul.f32 1.0, %v927
  %v929 = vmul.f32 %v921, %v909
  %v930 = vadd.f32 %v914, %v929
  %v931 = vtanh.pop %v930
  %v932 = vsub.f32 1.0, %v928
  %v933 = vmul.f32 %v932, %v931
  %v934 = vmul.f32 %v928, %v721
  %v935 = vadd.f32 %v933, %v934
  %936 = vst [vmem:[%s7 + $0x8] sm:$0xff] %v935
  %v937 = vld [vmem:[%s5] sm:$0xff]
  %v938 = vld [vmem:[%s5 + $0x8] sm:$0xff]
  %v939 = vld [vmem:[%s5 + $0x10] sm:$0xff]
  %v940 = vld [vmem:[%s5 + $0x18] sm:$0xff]
  %v941 = vld [vmem:[%s5 + $0x20] sm:$0xff]
  %v942 = vld [vmem:[%s5 + $0x28] sm:$0xff]
  %v943 = vld [vmem:[%s5 + $0x30] sm:$0xff]
  %v944 = vld [vmem:[%s5 + $0x38] sm:$0xff]
  %v945 = vld [vmem:[%s5 + $0x40] sm:$0xff]
  %v946 = vld [vmem:[%s5 + $0x48] sm:$0xff]
  %v947 = vld [vmem:[%s5 + $0x50] sm:$0xff]
  %v948 = vld [vmem:[%s5 + $0x58] sm:$0xff]
  %v949 = vld [vmem:[%s5 + $0x60] sm:$0xff]
  %v950 = vld [vmem:[%s5 + $0x68] sm:$0xff]
  %v951 = vld [vmem:[%s5 + $0x70] sm:$0xff]
  %v952 = vld [vmem:[%s5 + $0x78] sm:$0xff]
  %v953 = vld [vmem:[%s5 + $0x80] sm:$0xff]
  %v954 = vld [vmem:[%s5 + $0x88] sm:$0xff]
  %v955 = vld [vmem:[%s5 + $0x90] sm:$0xff]
  %v956 = vld [vmem:[%s5 + $0x98] sm:$0xff]
  %v957 = vld [vmem:[%s5 + $0xa0] sm:$0xff]
  %v958 = vld [vmem:[%s5 + $0xa8] sm:$0xff]
  %v959 = vld [vmem:[%s5 + $0xb0] sm:$0xff]
  %v960 = vld [vmem:[%s5 + $0xb8] sm:$0xff]
  %v961 = vld [vmem:[%s5 + $0xc0] sm:$0xff]
  %v962 = vld [vmem:[%s5 + $0xc8] sm:$0xff]
  %v963 = vld [vmem:[%s5 + $0xd0] sm:$0xff]
  %v964 = vld [vmem:[%s5 + $0xd8] sm:$0xff]
  %v965 = vld [vmem:[%s5 + $0xe0] sm:$0xff]
  %v966 = vld [vmem:[%s5 + $0xe8] sm:$0xff]
  %v967 = vld [vmem:[%s5 + $0xf0] sm:$0xff]
  %v968 = vld [vmem:[%s5 + $0xf8] sm:$0xff]
  %v969 = vld [vmem:[%s5 + $0x100] sm:$0xff]
  %v970 = vld [vmem:[%s5 + $0x108] sm:$0xff]
  %v971 = vld [vmem:[%s5 + $0x110] sm:$0xff]
  %v972 = vld [vmem:[%s5 + $0x118] sm:$0xff]
  %v973 = vld [vmem:[%s5 + $0x120] sm:$0xff]
  %v974 = vld [vmem:[%s5 + $0x128] sm:$0xff]
  %v975 = vld [vmem:[%s5 + $0x130] sm:$0xff]
  %v976 = vld [vmem:[%s5 + $0x138] sm:$0xff]
  %v977 = vld [vmem:[%s5 + $0x140] sm:$0xff]
  %v978 = vld [vmem:[%s5 + $0x148] sm:$0xff]
  %v979 = vld [vmem:[%s5 + $0x150] sm:$0xff]
  %v980 = vld [vmem:[%s5 + $0x158] sm:$0xff]
  %v981 = vld [vmem:[%s5 + $0x160] sm:$0xff]
  %v982 = vld [vmem:[%s5 + $0x168] sm:$0xff]
  %v983 = vld [vmem:[%s5 + $0x170] sm:$0xff]
  %v984 = vld [vmem:[%s5 + $0x178] sm:$0xff]
  %985 = vmatprep.subr.mxu0 %v983
  %986 = vmatpush1.msra.mxu0 %v982
  %987 = vmatprep.subr.mxu0 %v980
  %988 = vmatpush1.msra.mxu0 %v979
  %989 = vmatprep.subr.mxu0 %v977
  %990 = vmatpush1.msra.mxu0 %v976
  %991 = vmatprep.subr.mxu0 %v974
  %992 = vmatpush1.msra.mxu0 %v973
  %993 = vmatprep.subr.mxu0 %v971
  %994 = vmatpush1.msra.mxu0 %v970
  %995 = vmatprep.subr.mxu0 %v968
  %996 = vmatpush1.msra.mxu0 %v967
  %997 = vmatprep.subr.mxu0 %v965
  %998 = vmatpush1.msra.mxu0 %v964
  %999 = vmatprep.subr.mxu0 %v962
  %1000 = vmatpush1.msra.mxu0 %v961
  %1001 = vmatprep.subr.mxu0 %v959
  %1002 = vmatpush1.msra.mxu0 %v958
  %1003 = vmatprep.subr.mxu0 %v956
  %1004 = vmatpush1.msra.mxu0 %v955
  %1005 = vmatprep.subr.mxu0 %v953
  %1006 = vmatpush1.msra.mxu0 %v952
  %1007 = vmatprep.subr.mxu0 %v950
  %1008 = vmatpush1.msra.mxu0 %v949
  %1009 = vmatprep.subr.mxu0 %v947
  %1010 = vmatpush1.msra.mxu0 %v946
  %1011 = vmatprep.subr.mxu0 %v944
  %1012 = vmatpush1.msra.mxu0 %v943
  %1013 = vmatprep.subr.mxu0 %v941
  %1014 = vmatpush1.msra.mxu0 %v940
  %1015 = vmatprep.subr.mxu0 %v938
  %1016 = vmatpush1.msra.mxu0 %v937
  %1017 = vmatprep.subr.mxu0 0.0
  %1018 = vmatpush2.msra.mxu0 0.0
  %1019 = vmatprep.subr.mxu0 0.0
  %1020 = vmatpush2.msra.mxu0 0.0
  %1021 = vmatprep.subr.mxu0 0.0
  %1022 = vmatpush2.msra.mxu0 0.0
  %1023 = vmatprep.subr.mxu0 0.0
  %1024 = vmatpush2.msra.mxu0 0.0
  %1025 = vmatprep.subr.mxu0 0.0
  %1026 = vmatpush2.msra.mxu0 0.0
  %1027 = vmatprep.subr.mxu0 0.0
  %1028 = vmatpush2.msra.mxu0 0.0
  %1029 = vmatprep.subr.mxu0 0.0
  %1030 = vmatpush2.msra.mxu0 0.0
  %1031 = vmatprep.subr.mxu0 0.0
  %1032 = vmatpush2.msra.mxu0 0.0
  %1033 = vmatprep.subr.mxu0 0.0
  %1034 = vmatpush2.msra.mxu0 0.0
  %1035 = vmatprep.subr.mxu0 0.0
  %1036 = vmatpush2.msra.mxu0 0.0
  %1037 = vmatprep.subr.mxu0 0.0
  %1038 = vmatpush2.msra.mxu0 0.0
  %1039 = vmatprep.subr.mxu0 0.0
  %1040 = vmatpush2.msra.mxu0 0.0
  %1041 = vmatprep.subr.mxu0 0.0
  %1042 = vmatpush2.msra.mxu0 0.0
  %1043 = vmatprep.subr.mxu0 0.0
  %1044 = vmatpush2.msra.mxu0 0.0
  %1045 = vmatprep.subr.mxu0 0.0
  %1046 = vmatpush2.msra.mxu0 0.0
  %1047 = vmatprep.subr.mxu0 0.0
  %1048 = vmatpush2.msra.mxu0 0.0
  %1049 = vmatprep.mubr.f32.mxu0 0.0
  %1050 = vmatmul.mubr.f32.gmra.mxu0 %v935
  %v1051 = vpop.f32.mrf.mxu0
  %v1052 = vadd.f32 %v496, %v1051
  %v1053 = vpop.f32.mrf.mxu0
  %v1054 = vadd.f32 %v500, %v1053
  %1055 = vdwg.mxu0
  %1056 = vmatprep.subr.mxu0 0.0
  %1057 = vmatpush1.msra.mxu0 %v984
  %1058 = vmatprep.subr.mxu0 0.0
  %1059 = vmatpush1.msra.mxu0 %v981
  %1060 = vmatprep.subr.mxu0 0.0
  %1061 = vmatpush1.msra.mxu0 %v978
  %1062 = vmatprep.subr.mxu0 0.0
  %1063 = vmatpush1.msra.mxu0 %v975
  %1064 = vmatprep.subr.mxu0 0.0
  %1065 = vmatpush1.msra.mxu0 %v972
  %1066 = vmatprep.subr.mxu0 0.0
  %1067 = vmatpush1.msra.mxu0 %v969
  %1068 = vmatprep.subr.mxu0 0.0
  %1069 = vmatpush1.msra.mxu0 %v966
  %1070 = vmatprep.subr.mxu0 0.0
  %1071 = vmatpush1.msra.mxu0 %v963
  %1072 = vmatprep.subr.mxu0 0.0
  %1073 = vmatpush1.msra.mxu0 %v960
  %1074 = vmatprep.subr.mxu0 0.0
  %1075 = vmatpush1.msra.mxu0 %v957
  %1076 = vmatprep.subr.mxu0 0.0
  %1077 = vmatpush1.msra.mxu0 %v954
  %1078 = vmatprep.subr.mxu0 0.0
  %1079 = vmatpush1.msra.mxu0 %v951
  %1080 = vmatprep.subr.mxu0 0.0
  %1081 = vmatpush1.msra.mxu0 %v948
  %1082 = vmatprep.subr.mxu0 0.0
  %1083 = vmatpush1.msra.mxu0 %v945
  %1084 = vmatprep.subr.mxu0 0.0
  %1085 = vmatpush1.msra.mxu0 %v942
  %1086 = vmatprep.subr.mxu0 0.0
  %1087 = vmatpush1.msra.mxu0 %v939
  %1088 = vmatprep.subr.mxu0 0.0
  %1089 = vmatpush2.msra.mxu0 0.0
  %1090 = vmatprep.subr.mxu0 0.0
  %1091 = vmatpush2.msra.mxu0 0.0
  %1092 = vmatprep.subr.mxu0 0.0
  %1093 = vmatpush2.msra.mxu0 0.0
  %1094 = vmatprep.subr.mxu0 0.0
  %1095 = vmatpush2.msra.mxu0 0.0
  %1096 = vmatprep.subr.mxu0 0.0
  %1097 = vmatpush2.msra.mxu0 0.0
  %1098 = vmatprep.subr.mxu0 0.0
  %1099 = vmatpush2.msra.mxu0 0.0
  %1100 = vmatprep.subr.mxu0 0.0
  %1101 = vmatpush2.msra.mxu0 0.0
  %1102 = vmatprep.subr.mxu0 0.0
  %1103 = vmatpush2.msra.mxu0 0.0
  %1104 = vmatprep.subr.mxu0 0.0
  %1105 = vmatpush2.msra.mxu0 0.0
  %1106 = vmatprep.subr.mxu0 0.0
  %1107 = vmatpush2.msra.mxu0 0.0
  %1108 = vmatprep.subr.mxu0 0.0
  %1109 = vmatpush2.msra.mxu0 0.0
  %1110 = vmatprep.subr.mxu0 0.0
  %1111 = vmatpush2.msra.mxu0 0.0
  %1112 = vmatprep.subr.mxu0 0.0
  %1113 = vmatpush2.msra.mxu0 0.0
  %1114 = vmatprep.subr.mxu0 0.0
  %1115 = vmatpush2.msra.mxu0 0.0
  %1116 = vmatprep.subr.mxu0 0.0
  %1117 = vmatpush2.msra.mxu0 0.0
  %1118 = vmatprep.subr.mxu0 0.0
  %1119 = vmatpush2.msra.mxu0 0.0
  %1120 = vmatprep.mubr.f32.mxu0 0.0
  %1121 = vmatmul.mubr.f32.gmra.mxu0 %v935
  %v1122 = vpop.f32.mrf.mxu0
  %v1123 = vadd.f32 %v504, %v1122
  %v1124 = vpop.f32.mrf.mxu0
  %1125 = vdwg.mxu0
  %v1126 = vld [vmem:[#allocation2 + $0x30] sm:$0xff]
  %v1127 = vld [vmem:[#allocation2 + $0x38] sm:$0xff]
  %v1128 = vld [vmem:[#allocation2 + $0x40] sm:$0xff]
  %v1129 = vadd.f32 %v1126, %v1052
  %v1130 = vxor.u32 %v1129, 2147483648
  %v1131 = vmul.f32 %v1130, 1.442695
  %v1132 = vpow.pop %v1131
  %v1133 = vadd.f32 %v1132, 1.0
  %v1134 = vrcp.pop %v1133
  %v1135 = vmul.f32 1.0, %v1134
  %v1136 = vadd.f32 %v1127, %v1054
  %v1137 = vxor.u32 %v1136, 2147483648
  %v1138 = vmul.f32 %v1137, 1.442695
  %v1139 = vpow.pop %v1138
  %v1140 = vadd.f32 %v1139, 1.0
  %v1141 = vrcp.pop %v1140
  %v1142 = vmul.f32 1.0, %v1141
  %v1143 = vmul.f32 %v1135, %v1123
  %v1144 = vadd.f32 %v1128, %v1143
  %v1145 = vtanh.pop %v1144
  %v1146 = vsub.f32 1.0, %v1142
  %v1147 = vmul.f32 %v1146, %v1145
  %v1148 = vmul.f32 %v1142, %v935
  %v1149 = vadd.f32 %v1147, %v1148
  %1150 = vst [vmem:[%s7 + $0x10] sm:$0xff] %v1149
  %v1151 = vld [vmem:[%s5] sm:$0xff]
  %v1152 = vld [vmem:[%s5 + $0x8] sm:$0xff]
  %v1153 = vld [vmem:[%s5 + $0x10] sm:$0xff]
  %v1154 = vld [vmem:[%s5 + $0x18] sm:$0xff]
  %v1155 = vld [vmem:[%s5 + $0x20] sm:$0xff]
  %v1156 = vld [vmem:[%s5 + $0x28] sm:$0xff]
  %v1157 = vld [vmem:[%s5 + $0x30] sm:$0xff]
  %v1158 = vld [vmem:[%s5 + $0x38] sm:$0xff]
  %v1159 = vld [vmem:[%s5 + $0x40] sm:$0xff]
  %v1160 = vld [vmem:[%s5 + $0x48] sm:$0xff]
  %v1161 = vld [vmem:[%s5 + $0x50] sm:$0xff]
  %v1162 = vld [vmem:[%s5 + $0x58] sm:$0xff]
  %v1163 = vld [vmem:[%s5 + $0x60] sm:$0xff]
  %v1164 = vld [vmem:[%s5 + $0x68] sm:$0xff]
  %v1165 = vld [vmem:[%s5 + $0x70] sm:$0xff]
  %v1166 = vld [vmem:[%s5 + $0x78] sm:$0xff]
  %v1167 = vld [vmem:[%s5 + $0x80] sm:$0xff]
  %v1168 = vld [vmem:[%s5 + $0x88] sm:$0xff]
  %v1169 = vld [vmem:[%s5 + $0x90] sm:$0xff]
  %v1170 = vld [vmem:[%s5 + $0x98] sm:$0xff]
  %v1171 = vld [vmem:[%s5 + $0xa0] sm:$0xff]
  %v1172 = vld [vmem:[%s5 + $0xa8] sm:$0xff]
  %v1173 = vld [vmem:[%s5 + $0xb0] sm:$0xff]
  %v1174 = vld [vmem:[%s5 + $0xb8] sm:$0xff]
  %v1175 = vld [vmem:[%s5 + $0xc0] sm:$0xff]
  %v1176 = vld [vmem:[%s5 + $0xc8] sm:$0xff]
  %v1177 = vld [vmem:[%s5 + $0xd0] sm:$0xff]
  %v1178 = vld [vmem:[%s5 + $0xd8] sm:$0xff]
  %v1179 = vld [vmem:[%s5 + $0xe0] sm:$0xff]
  %v1180 = vld [vmem:[%s5 + $0xe8] sm:$0xff]
  %v1181 = vld [vmem:[%s5 + $0xf0] sm:$0xff]
  %v1182 = vld [vmem:[%s5 + $0xf8] sm:$0xff]
  %v1183 = vld [vmem:[%s5 + $0x100] sm:$0xff]
  %v1184 = vld [vmem:[%s5 + $0x108] sm:$0xff]
  %v1185 = vld [vmem:[%s5 + $0x110] sm:$0xff]
  %v1186 = vld [vmem:[%s5 + $0x118] sm:$0xff]
  %v1187 = vld [vmem:[%s5 + $0x120] sm:$0xff]
  %v1188 = vld [vmem:[%s5 + $0x128] sm:$0xff]
  %v1189 = vld [vmem:[%s5 + $0x130] sm:$0xff]
  %v1190 = vld [vmem:[%s5 + $0x138] sm:$0xff]
  %v1191 = vld [vmem:[%s5 + $0x140] sm:$0xff]
  %v1192 = vld [vmem:[%s5 + $0x148] sm:$0xff]
  %v1193 = vld [vmem:[%s5 + $0x150] sm:$0xff]
  %v1194 = vld [vmem:[%s5 + $0x158] sm:$0xff]
  %v1195 = vld [vmem:[%s5 + $0x160] sm:$0xff]
  %v1196 = vld [vmem:[%s5 + $0x168] sm:$0xff]
  %v1197 = vld [vmem:[%s5 + $0x170] sm:$0xff]
  %v1198 = vld [vmem:[%s5 + $0x178] sm:$0xff]
  %1199 = vmatprep.subr.mxu0 %v1197
  %1200 = vmatpush1.msra.mxu0 %v1196
  %1201 = vmatprep.subr.mxu0 %v1194
  %1202 = vmatpush1.msra.mxu0 %v1193
  %1203 = vmatprep.subr.mxu0 %v1191
  %1204 = vmatpush1.msra.mxu0 %v1190
  %1205 = vmatprep.subr.mxu0 %v1188
  %1206 = vmatpush1.msra.mxu0 %v1187
  %1207 = vmatprep.subr.mxu0 %v1185
  %1208 = vmatpush1.msra.mxu0 %v1184
  %1209 = vmatprep.subr.mxu0 %v1182
  %1210 = vmatpush1.msra.mxu0 %v1181
  %1211 = vmatprep.subr.mxu0 %v1179
  %1212 = vmatpush1.msra.mxu0 %v1178
  %1213 = vmatprep.subr.mxu0 %v1176
  %1214 = vmatpush1.msra.mxu0 %v1175
  %1215 = vmatprep.subr.mxu0 %v1173
  %1216 = vmatpush1.msra.mxu0 %v1172
  %1217 = vmatprep.subr.mxu0 %v1170
  %1218 = vmatpush1.msra.mxu0 %v1169
  %1219 = vmatprep.subr.mxu0 %v1167
  %1220 = vmatpush1.msra.mxu0 %v1166
  %1221 = vmatprep.subr.mxu0 %v1164
  %1222 = vmatpush1.msra.mxu0 %v1163
  %1223 = vmatprep.subr.mxu0 %v1161
  %1224 = vmatpush1.msra.mxu0 %v1160
  %1225 = vmatprep.subr.mxu0 %v1158
  %1226 = vmatpush1.msra.mxu0 %v1157
  %1227 = vmatprep.subr.mxu0 %v1155
  %1228 = vmatpush1.msra.mxu0 %v1154
  %1229 = vmatprep.subr.mxu0 %v1152
  %1230 = vmatpush1.msra.mxu0 %v1151
  %1231 = vmatprep.subr.mxu0 0.0
  %1232 = vmatpush2.msra.mxu0 0.0
  %1233 = vmatprep.subr.mxu0 0.0
  %1234 = vmatpush2.msra.mxu0 0.0
  %1235 = vmatprep.subr.mxu0 0.0
  %1236 = vmatpush2.msra.mxu0 0.0
  %1237 = vmatprep.subr.mxu0 0.0
  %1238 = vmatpush2.msra.mxu0 0.0
  %1239 = vmatprep.subr.mxu0 0.0
  %1240 = vmatpush2.msra.mxu0 0.0
  %1241 = vmatprep.subr.mxu0 0.0
  %1242 = vmatpush2.msra.mxu0 0.0
  %1243 = vmatprep.subr.mxu0 0.0
  %1244 = vmatpush2.msra.mxu0 0.0
  %1245 = vmatprep.subr.mxu0 0.0
  %1246 = vmatpush2.msra.mxu0 0.0
  %1247 = vmatprep.subr.mxu0 0.0
  %1248 = vmatpush2.msra.mxu0 0.0
  %1249 = vmatprep.subr.mxu0 0.0
  %1250 = vmatpush2.msra.mxu0 0.0
  %1251 = vmatprep.subr.mxu0 0.0
  %1252 = vmatpush2.msra.mxu0 0.0
  %1253 = vmatprep.subr.mxu0 0.0
  %1254 = vmatpush2.msra.mxu0 0.0
  %1255 = vmatprep.subr.mxu0 0.0
  %1256 = vmatpush2.msra.mxu0 0.0
  %1257 = vmatprep.subr.mxu0 0.0
  %1258 = vmatpush2.msra.mxu0 0.0
  %1259 = vmatprep.subr.mxu0 0.0
  %1260 = vmatpush2.msra.mxu0 0.0
  %1261 = vmatprep.subr.mxu0 0.0
  %1262 = vmatpush2.msra.mxu0 0.0
  %1263 = vmatprep.mubr.f32.mxu0 0.0
  %1264 = vmatmul.mubr.f32.gmra.mxu0 %v1149
  %v1265 = vpop.f32.mrf.mxu0
  %v1266 = vadd.f32 %v496, %v1265
  %v1267 = vpop.f32.mrf.mxu0
  %v1268 = vadd.f32 %v500, %v1267
  %1269 = vdwg.mxu0
  %1270 = vmatprep.subr.mxu0 0.0
  %1271 = vmatpush1.msra.mxu0 %v1198
  %1272 = vmatprep.subr.mxu0 0.0
  %1273 = vmatpush1.msra.mxu0 %v1195
  %1274 = vmatprep.subr.mxu0 0.0
  %1275 = vmatpush1.msra.mxu0 %v1192
  %1276 = vmatprep.subr.mxu0 0.0
  %1277 = vmatpush1.msra.mxu0 %v1189
  %1278 = vmatprep.subr.mxu0 0.0
  %1279 = vmatpush1.msra.mxu0 %v1186
  %1280 = vmatprep.subr.mxu0 0.0
  %1281 = vmatpush1.msra.mxu0 %v1183
  %1282 = vmatprep.subr.mxu0 0.0
  %1283 = vmatpush1.msra.mxu0 %v1180
  %1284 = vmatprep.subr.mxu0 0.0
  %1285 = vmatpush1.msra.mxu0 %v1177
  %1286 = vmatprep.subr.mxu0 0.0
  %1287 = vmatpush1.msra.mxu0 %v1174
  %1288 = vmatprep.subr.mxu0 0.0
  %1289 = vmatpush1.msra.mxu0 %v1171
  %1290 = vmatprep.subr.mxu0 0.0
  %1291 = vmatpush1.msra.mxu0 %v1168
  %1292 = vmatprep.subr.mxu0 0.0
  %1293 = vmatpush1.msra.mxu0 %v1165
  %1294 = vmatprep.subr.mxu0 0.0
  %1295 = vmatpush1.msra.mxu0 %v1162
  %1296 = vmatprep.subr.mxu0 0.0
  %1297 = vmatpush1.msra.mxu0 %v1159
  %1298 = vmatprep.subr.mxu0 0.0
  %1299 = vmatpush1.msra.mxu0 %v1156
  %1300 = vmatprep.subr.mxu0 0.0
  %1301 = vmatpush1.msra.mxu0 %v1153
  %1302 = vmatprep.subr.mxu0 0.0
  %1303 = vmatpush2.msra.mxu0 0.0
  %1304 = vmatprep.subr.mxu0 0.0
  %1305 = vmatpush2.msra.mxu0 0.0
  %1306 = vmatprep.subr.mxu0 0.0
  %1307 = vmatpush2.msra.mxu0 0.0
  %1308 = vmatprep.subr.mxu0 0.0
  %1309 = vmatpush2.msra.mxu0 0.0
  %1310 = vmatprep.subr.mxu0 0.0
  %1311 = vmatpush2.msra.mxu0 0.0
  %1312 = vmatprep.subr.mxu0 0.0
  %1313 = vmatpush2.msra.mxu0 0.0
  %1314 = vmatprep.subr.mxu0 0.0
  %1315 = vmatpush2.msra.mxu0 0.0
  %1316 = vmatprep.subr.mxu0 0.0
  %1317 = vmatpush2.msra.mxu0 0.0
  %1318 = vmatprep.subr.mxu0 0.0
  %1319 = vmatpush2.msra.mxu0 0.0
  %1320 = vmatprep.subr.mxu0 0.0
  %1321 = vmatpush2.msra.mxu0 0.0
  %1322 = vmatprep.subr.mxu0 0.0
  %1323 = vmatpush2.msra.mxu0 0.0
  %1324 = vmatprep.subr.mxu0 0.0
  %1325 = vmatpush2.msra.mxu0 0.0
  %1326 = vmatprep.subr.mxu0 0.0
  %1327 = vmatpush2.msra.mxu0 0.0
  %1328 = vmatprep.subr.mxu0 0.0
  %1329 = vmatpush2.msra.mxu0 0.0
  %1330 = vmatprep.subr.mxu0 0.0
  %1331 = vmatpush2.msra.mxu0 0.0
  %1332 = vmatprep.subr.mxu0 0.0
  %1333 = vmatpush2.msra.mxu0 0.0
  %1334 = vmatprep.mubr.f32.mxu0 0.0
  %1335 = vmatmul.mubr.f32.gmra.mxu0 %v1149
  %v1336 = vpop.f32.mrf.mxu0
  %v1337 = vadd.f32 %v504, %v1336
  %v1338 = vpop.f32.mrf.mxu0
  %1339 = vdwg.mxu0
  %v1340 = vld [vmem:[#allocation2 + $0x48] sm:$0xff]
  %v1341 = vld [vmem:[#allocation2 + $0x50] sm:$0xff]
  %v1342 = vld [vmem:[#allocation2 + $0x58] sm:$0xff]
  %v1343 = vadd.f32 %v1340, %v1266
  %v1344 = vxor.u32 %v1343, 2147483648
  %v1345 = vmul.f32 %v1344, 1.442695
  %v1346 = vpow.pop %v1345
  %v1347 = vadd.f32 %v1346, 1.0
  %v1348 = vrcp.pop %v1347
  %v1349 = vmul.f32 1.0, %v1348
  %v1350 = vadd.f32 %v1341, %v1268
  %v1351 = vxor.u32 %v1350, 2147483648
  %v1352 = vmul.f32 %v1351, 1.442695
  %v1353 = vpow.pop %v1352
  %v1354 = vadd.f32 %v1353, 1.0
  %v1355 = vrcp.pop %v1354
  %v1356 = vmul.f32 1.0, %v1355
  %v1357 = vmul.f32 %v1349, %v1337
  %v1358 = vadd.f32 %v1342, %v1357
  %v1359 = vtanh.pop %v1358
  %v1360 = vsub.f32 1.0, %v1356
  %v1361 = vmul.f32 %v1360, %v1359
  %v1362 = vmul.f32 %v1356, %v1149
  %v1363 = vadd.f32 %v1361, %v1362
  %1364 = vst [vmem:[%s7 + $0x18] sm:$0xff] %v1363
  %v1365 = vld [vmem:[%s5] sm:$0xff]
  %v1366 = vld [vmem:[%s5 + $0x8] sm:$0xff]
  %v1367 = vld [vmem:[%s5 + $0x10] sm:$0xff]
  %v1368 = vld [vmem:[%s5 + $0x18] sm:$0xff]
  %v1369 = vld [vmem:[%s5 + $0x20] sm:$0xff]
  %v1370 = vld [vmem:[%s5 + $0x28] sm:$0xff]
  %v1371 = vld [vmem:[%s5 + $0x30] sm:$0xff]
  %v1372 = vld [vmem:[%s5 + $0x38] sm:$0xff]
  %v1373 = vld [vmem:[%s5 + $0x40] sm:$0xff]
  %v1374 = vld [vmem:[%s5 + $0x48] sm:$0xff]
  %v1375 = vld [vmem:[%s5 + $0x50] sm:$0xff]
  %v1376 = vld [vmem:[%s5 + $0x58] sm:$0xff]
  %v1377 = vld [vmem:[%s5 + $0x60] sm:$0xff]
  %v1378 = vld [vmem:[%s5 + $0x68] sm:$0xff]
  %v1379 = vld [vmem:[%s5 + $0x70] sm:$0xff]
  %v1380 = vld [vmem:[%s5 + $0x78] sm:$0xff]
  %v1381 = vld [vmem:[%s5 + $0x80] sm:$0xff]
  %v1382 = vld [vmem:[%s5 + $0x88] sm:$0xff]
  %v1383 = vld [vmem:[%s5 + $0x90] sm:$0xff]
  %v1384 = vld [vmem:[%s5 + $0x98] sm:$0xff]
  %v1385 = vld [vmem:[%s5 + $0xa0] sm:$0xff]
  %v1386 = vld [vmem:[%s5 + $0xa8] sm:$0xff]
  %v1387 = vld [vmem:[%s5 + $0xb0] sm:$0xff]
  %v1388 = vld [vmem:[%s5 + $0xb8] sm:$0xff]
  %v1389 = vld [vmem:[%s5 + $0xc0] sm:$0xff]
  %v1390 = vld [vmem:[%s5 + $0xc8] sm:$0xff]
  %v1391 = vld [vmem:[%s5 + $0xd0] sm:$0xff]
  %v1392 = vld [vmem:[%s5 + $0xd8] sm:$0xff]
  %v1393 = vld [vmem:[%s5 + $0xe0] sm:$0xff]
  %v1394 = vld [vmem:[%s5 + $0xe8] sm:$0xff]
  %v1395 = vld [vmem:[%s5 + $0xf0] sm:$0xff]
  %v1396 = vld [vmem:[%s5 + $0xf8] sm:$0xff]
  %v1397 = vld [vmem:[%s5 + $0x100] sm:$0xff]
  %v1398 = vld [vmem:[%s5 + $0x108] sm:$0xff]
  %v1399 = vld [vmem:[%s5 + $0x110] sm:$0xff]
  %v1400 = vld [vmem:[%s5 + $0x118] sm:$0xff]
  %v1401 = vld [vmem:[%s5 + $0x120] sm:$0xff]
  %v1402 = vld [vmem:[%s5 + $0x128] sm:$0xff]
  %v1403 = vld [vmem:[%s5 + $0x130] sm:$0xff]
  %v1404 = vld [vmem:[%s5 + $0x138] sm:$0xff]
  %v1405 = vld [vmem:[%s5 + $0x140] sm:$0xff]
  %v1406 = vld [vmem:[%s5 + $0x148] sm:$0xff]
  %v1407 = vld [vmem:[%s5 + $0x150] sm:$0xff]
  %v1408 = vld [vmem:[%s5 + $0x158] sm:$0xff]
  %v1409 = vld [vmem:[%s5 + $0x160] sm:$0xff]
  %v1410 = vld [vmem:[%s5 + $0x168] sm:$0xff]
  %v1411 = vld [vmem:[%s5 + $0x170] sm:$0xff]
  %v1412 = vld [vmem:[%s5 + $0x178] sm:$0xff]
  %1413 = vmatprep.subr.mxu0 %v1411
  %1414 = vmatpush1.msra.mxu0 %v1410
  %1415 = vmatprep.subr.mxu0 %v1408
  %1416 = vmatpush1.msra.mxu0 %v1407
  %1417 = vmatprep.subr.mxu0 %v1405
  %1418 = vmatpush1.msra.mxu0 %v1404
  %1419 = vmatprep.subr.mxu0 %v1402
  %1420 = vmatpush1.msra.mxu0 %v1401
  %1421 = vmatprep.subr.mxu0 %v1399
  %1422 = vmatpush1.msra.mxu0 %v1398
  %1423 = vmatprep.subr.mxu0 %v1396
  %1424 = vmatpush1.msra.mxu0 %v1395
  %1425 = vmatprep.subr.mxu0 %v1393
  %1426 = vmatpush1.msra.mxu0 %v1392
  %1427 = vmatprep.subr.mxu0 %v1390
  %1428 = vmatpush1.msra.mxu0 %v1389
  %1429 = vmatprep.subr.mxu0 %v1387
  %1430 = vmatpush1.msra.mxu0 %v1386
  %1431 = vmatprep.subr.mxu0 %v1384
  %1432 = vmatpush1.msra.mxu0 %v1383
  %1433 = vmatprep.subr.mxu0 %v1381
  %1434 = vmatpush1.msra.mxu0 %v1380
  %1435 = vmatprep.subr.mxu0 %v1378
  %1436 = vmatpush1.msra.mxu0 %v1377
  %1437 = vmatprep.subr.mxu0 %v1375
  %1438 = vmatpush1.msra.mxu0 %v1374
  %1439 = vmatprep.subr.mxu0 %v1372
  %1440 = vmatpush1.msra.mxu0 %v1371
  %1441 = vmatprep.subr.mxu0 %v1369
  %1442 = vmatpush1.msra.mxu0 %v1368
  %1443 = vmatprep.subr.mxu0 %v1366
  %1444 = vmatpush1.msra.mxu0 %v1365
  %1445 = vmatprep.subr.mxu0 0.0
  %1446 = vmatpush2.msra.mxu0 0.0
  %1447 = vmatprep.subr.mxu0 0.0
  %1448 = vmatpush2.msra.mxu0 0.0
  %1449 = vmatprep.subr.mxu0 0.0
  %1450 = vmatpush2.msra.mxu0 0.0
  %1451 = vmatprep.subr.mxu0 0.0
  %1452 = vmatpush2.msra.mxu0 0.0
  %1453 = vmatprep.subr.mxu0 0.0
  %1454 = vmatpush2.msra.mxu0 0.0
  %1455 = vmatprep.subr.mxu0 0.0
  %1456 = vmatpush2.msra.mxu0 0.0
  %1457 = vmatprep.subr.mxu0 0.0
  %1458 = vmatpush2.msra.mxu0 0.0
  %1459 = vmatprep.subr.mxu0 0.0
  %1460 = vmatpush2.msra.mxu0 0.0
  %1461 = vmatprep.subr.mxu0 0.0
  %1462 = vmatpush2.msra.mxu0 0.0
  %1463 = vmatprep.subr.mxu0 0.0
  %1464 = vmatpush2.msra.mxu0 0.0
  %1465 = vmatprep.subr.mxu0 0.0
  %1466 = vmatpush2.msra.mxu0 0.0
  %1467 = vmatprep.subr.mxu0 0.0
  %1468 = vmatpush2.msra.mxu0 0.0
  %1469 = vmatprep.subr.mxu0 0.0
  %1470 = vmatpush2.msra.mxu0 0.0
  %1471 = vmatprep.subr.mxu0 0.0
  %1472 = vmatpush2.msra.mxu0 0.0
  %1473 = vmatprep.subr.mxu0 0.0
  %1474 = vmatpush2.msra.mxu0 0.0
  %1475 = vmatprep.subr.mxu0 0.0
  %1476 = vmatpush2.msra.mxu0 0.0
  %1477 = vmatprep.mubr.f32.mxu0 0.0
  %1478 = vmatmul.mubr.f32.gmra.mxu0 %v1363
  %v1479 = vpop.f32.mrf.mxu0
  %v1480 = vadd.f32 %v496, %v1479
  %v1481 = vpop.f32.mrf.mxu0
  %v1482 = vadd.f32 %v500, %v1481
  %1483 = vdwg.mxu0
  %1484 = vmatprep.subr.mxu0 0.0
  %1485 = vmatpush1.msra.mxu0 %v1412
  %1486 = vmatprep.subr.mxu0 0.0
  %1487 = vmatpush1.msra.mxu0 %v1409
  %1488 = vmatprep.subr.mxu0 0.0
  %1489 = vmatpush1.msra.mxu0 %v1406
  %1490 = vmatprep.subr.mxu0 0.0
  %1491 = vmatpush1.msra.mxu0 %v1403
  %1492 = vmatprep.subr.mxu0 0.0
  %1493 = vmatpush1.msra.mxu0 %v1400
  %1494 = vmatprep.subr.mxu0 0.0
  %1495 = vmatpush1.msra.mxu0 %v1397
  %1496 = vmatprep.subr.mxu0 0.0
  %1497 = vmatpush1.msra.mxu0 %v1394
  %1498 = vmatprep.subr.mxu0 0.0
  %1499 = vmatpush1.msra.mxu0 %v1391
  %1500 = vmatprep.subr.mxu0 0.0
  %1501 = vmatpush1.msra.mxu0 %v1388
  %1502 = vmatprep.subr.mxu0 0.0
  %1503 = vmatpush1.msra.mxu0 %v1385
  %1504 = vmatprep.subr.mxu0 0.0
  %1505 = vmatpush1.msra.mxu0 %v1382
  %1506 = vmatprep.subr.mxu0 0.0
  %1507 = vmatpush1.msra.mxu0 %v1379
  %1508 = vmatprep.subr.mxu0 0.0
  %1509 = vmatpush1.msra.mxu0 %v1376
  %1510 = vmatprep.subr.mxu0 0.0
  %1511 = vmatpush1.msra.mxu0 %v1373
  %1512 = vmatprep.subr.mxu0 0.0
  %1513 = vmatpush1.msra.mxu0 %v1370
  %1514 = vmatprep.subr.mxu0 0.0
  %1515 = vmatpush1.msra.mxu0 %v1367
  %1516 = vmatprep.subr.mxu0 0.0
  %1517 = vmatpush2.msra.mxu0 0.0
  %1518 = vmatprep.subr.mxu0 0.0
  %1519 = vmatpush2.msra.mxu0 0.0
  %1520 = vmatprep.subr.mxu0 0.0
  %1521 = vmatpush2.msra.mxu0 0.0
  %1522 = vmatprep.subr.mxu0 0.0
  %1523 = vmatpush2.msra.mxu0 0.0
  %1524 = vmatprep.subr.mxu0 0.0
  %1525 = vmatpush2.msra.mxu0 0.0
  %1526 = vmatprep.subr.mxu0 0.0
  %1527 = vmatpush2.msra.mxu0 0.0
  %1528 = vmatprep.subr.mxu0 0.0
  %1529 = vmatpush2.msra.mxu0 0.0
  %1530 = vmatprep.subr.mxu0 0.0
  %1531 = vmatpush2.msra.mxu0 0.0
  %1532 = vmatprep.subr.mxu0 0.0
  %1533 = vmatpush2.msra.mxu0 0.0
  %1534 = vmatprep.subr.mxu0 0.0
  %1535 = vmatpush2.msra.mxu0 0.0
  %1536 = vmatprep.subr.mxu0 0.0
  %1537 = vmatpush2.msra.mxu0 0.0
  %1538 = vmatprep.subr.mxu0 0.0
  %1539 = vmatpush2.msra.mxu0 0.0
  %1540 = vmatprep.subr.mxu0 0.0
  %1541 = vmatpush2.msra.mxu0 0.0
  %1542 = vmatprep.subr.mxu0 0.0
  %1543 = vmatpush2.msra.mxu0 0.0
  %1544 = vmatprep.subr.mxu0 0.0
  %1545 = vmatpush2.msra.mxu0 0.0
  %1546 = vmatprep.subr.mxu0 0.0
  %1547 = vmatpush2.msra.mxu0 0.0
  %1548 = vmatprep.mubr.f32.mxu0 0.0
  %1549 = vmatmul.mubr.f32.gmra.mxu0 %v1363
  %v1550 = vpop.f32.mrf.mxu0
  %v1551 = vadd.f32 %v504, %v1550
  %v1552 = vpop.f32.mrf.mxu0
  %1553 = vdwg.mxu0
  %v1554 = vld [vmem:[#allocation2 + $0x60] sm:$0xff]
  %v1555 = vld [vmem:[#allocation2 + $0x68] sm:$0xff]
  %v1556 = vld [vmem:[#allocation2 + $0x70] sm:$0xff]
  %v1557 = vadd.f32 %v1554, %v1480
  %v1558 = vxor.u32 %v1557, 2147483648
  %v1559 = vmul.f32 %v1558, 1.442695
  %v1560 = vpow.pop %v1559
  %v1561 = vadd.f32 %v1560, 1.0
  %v1562 = vrcp.pop %v1561
  %v1563 = vmul.f32 1.0, %v1562
  %v1564 = vadd.f32 %v1555, %v1482
  %v1565 = vxor.u32 %v1564, 2147483648
  %v1566 = vmul.f32 %v1565, 1.442695
  %v1567 = vpow.pop %v1566
  %v1568 = vadd.f32 %v1567, 1.0
  %v1569 = vrcp.pop %v1568
  %v1570 = vmul.f32 1.0, %v1569
  %v1571 = vmul.f32 %v1563, %v1551
  %v1572 = vadd.f32 %v1556, %v1571
  %v1573 = vtanh.pop %v1572
  %v1574 = vsub.f32 1.0, %v1570
  %v1575 = vmul.f32 %v1574, %v1573
  %v1576 = vmul.f32 %v1570, %v1363
  %v1577 = vadd.f32 %v1575, %v1576
  %1578 = vst [vmem:[%s7 + $0x20] sm:$0xff] %v1577
  %v1579 = vld [vmem:[%s5] sm:$0xff]
  %v1580 = vld [vmem:[%s5 + $0x8] sm:$0xff]
  %v1581 = vld [vmem:[%s5 + $0x10] sm:$0xff]
  %v1582 = vld [vmem:[%s5 + $0x18] sm:$0xff]
  %v1583 = vld [vmem:[%s5 + $0x20] sm:$0xff]
  %v1584 = vld [vmem:[%s5 + $0x28] sm:$0xff]
  %v1585 = vld [vmem:[%s5 + $0x30] sm:$0xff]
  %v1586 = vld [vmem:[%s5 + $0x38] sm:$0xff]
  %v1587 = vld [vmem:[%s5 + $0x40] sm:$0xff]
  %v1588 = vld [vmem:[%s5 + $0x48] sm:$0xff]
  %v1589 = vld [vmem:[%s5 + $0x50] sm:$0xff]
  %v1590 = vld [vmem:[%s5 + $0x58] sm:$0xff]
  %v1591 = vld [vmem:[%s5 + $0x60] sm:$0xff]
  %v1592 = vld [vmem:[%s5 + $0x68] sm:$0xff]
  %v1593 = vld [vmem:[%s5 + $0x70] sm:$0xff]
  %v1594 = vld [vmem:[%s5 + $0x78] sm:$0xff]
  %v1595 = vld [vmem:[%s5 + $0x80] sm:$0xff]
  %v1596 = vld [vmem:[%s5 + $0x88] sm:$0xff]
  %v1597 = vld [vmem:[%s5 + $0x90] sm:$0xff]
  %v1598 = vld [vmem:[%s5 + $0x98] sm:$0xff]
  %v1599 = vld [vmem:[%s5 + $0xa0] sm:$0xff]
  %v1600 = vld [vmem:[%s5 + $0xa8] sm:$0xff]
  %v1601 = vld [vmem:[%s5 + $0xb0] sm:$0xff]
  %v1602 = vld [vmem:[%s5 + $0xb8] sm:$0xff]
  %v1603 = vld [vmem:[%s5 + $0xc0] sm:$0xff]
  %v1604 = vld [vmem:[%s5 + $0xc8] sm:$0xff]
  %v1605 = vld [vmem:[%s5 + $0xd0] sm:$0xff]
  %v1606 = vld [vmem:[%s5 + $0xd8] sm:$0xff]
  %v1607 = vld [vmem:[%s5 + $0xe0] sm:$0xff]
  %v1608 = vld [vmem:[%s5 + $0xe8] sm:$0xff]
  %v1609 = vld [vmem:[%s5 + $0xf0] sm:$0xff]
  %v1610 = vld [vmem:[%s5 + $0xf8] sm:$0xff]
  %v1611 = vld [vmem:[%s5 + $0x100] sm:$0xff]
  %v1612 = vld [vmem:[%s5 + $0x108] sm:$0xff]
  %v1613 = vld [vmem:[%s5 + $0x110] sm:$0xff]
  %v1614 = vld [vmem:[%s5 + $0x118] sm:$0xff]
  %v1615 = vld [vmem:[%s5 + $0x120] sm:$0xff]
  %v1616 = vld [vmem:[%s5 + $0x128] sm:$0xff]
  %v1617 = vld [vmem:[%s5 + $0x130] sm:$0xff]
  %v1618 = vld [vmem:[%s5 + $0x138] sm:$0xff]
  %v1619 = vld [vmem:[%s5 + $0x140] sm:$0xff]
  %v1620 = vld [vmem:[%s5 + $0x148] sm:$0xff]
  %v1621 = vld [vmem:[%s5 + $0x150] sm:$0xff]
  %v1622 = vld [vmem:[%s5 + $0x158] sm:$0xff]
  %v1623 = vld [vmem:[%s5 + $0x160] sm:$0xff]
  %v1624 = vld [vmem:[%s5 + $0x168] sm:$0xff]
  %v1625 = vld [vmem:[%s5 + $0x170] sm:$0xff]
  %v1626 = vld [vmem:[%s5 + $0x178] sm:$0xff]
  %1627 = vmatprep.subr.mxu0 %v1625
  %1628 = vmatpush1.msra.mxu0 %v1624
  %1629 = vmatprep.subr.mxu0 %v1622
  %1630 = vmatpush1.msra.mxu0 %v1621
  %1631 = vmatprep.subr.mxu0 %v1619
  %1632 = vmatpush1.msra.mxu0 %v1618
  %1633 = vmatprep.subr.mxu0 %v1616
  %1634 = vmatpush1.msra.mxu0 %v1615
  %1635 = vmatprep.subr.mxu0 %v1613
  %1636 = vmatpush1.msra.mxu0 %v1612
  %1637 = vmatprep.subr.mxu0 %v1610
  %1638 = vmatpush1.msra.mxu0 %v1609
  %1639 = vmatprep.subr.mxu0 %v1607
  %1640 = vmatpush1.msra.mxu0 %v1606
  %1641 = vmatprep.subr.mxu0 %v1604
  %1642 = vmatpush1.msra.mxu0 %v1603
  %1643 = vmatprep.subr.mxu0 %v1601
  %1644 = vmatpush1.msra.mxu0 %v1600
  %1645 = vmatprep.subr.mxu0 %v1598
  %1646 = vmatpush1.msra.mxu0 %v1597
  %1647 = vmatprep.subr.mxu0 %v1595
  %1648 = vmatpush1.msra.mxu0 %v1594
  %1649 = vmatprep.subr.mxu0 %v1592
  %1650 = vmatpush1.msra.mxu0 %v1591
  %1651 = vmatprep.subr.mxu0 %v1589
  %1652 = vmatpush1.msra.mxu0 %v1588
  %1653 = vmatprep.subr.mxu0 %v1586
  %1654 = vmatpush1.msra.mxu0 %v1585
  %1655 = vmatprep.subr.mxu0 %v1583
  %1656 = vmatpush1.msra.mxu0 %v1582
  %1657 = vmatprep.subr.mxu0 %v1580
  %1658 = vmatpush1.msra.mxu0 %v1579
  %1659 = vmatprep.subr.mxu0 0.0
  %1660 = vmatpush2.msra.mxu0 0.0
  %1661 = vmatprep.subr.mxu0 0.0
  %1662 = vmatpush2.msra.mxu0 0.0
  %1663 = vmatprep.subr.mxu0 0.0
  %1664 = vmatpush2.msra.mxu0 0.0
  %1665 = vmatprep.subr.mxu0 0.0
  %1666 = vmatpush2.msra.mxu0 0.0
  %1667 = vmatprep.subr.mxu0 0.0
  %1668 = vmatpush2.msra.mxu0 0.0
  %1669 = vmatprep.subr.mxu0 0.0
  %1670 = vmatpush2.msra.mxu0 0.0
  %1671 = vmatprep.subr.mxu0 0.0
  %1672 = vmatpush2.msra.mxu0 0.0
  %1673 = vmatprep.subr.mxu0 0.0
  %1674 = vmatpush2.msra.mxu0 0.0
  %1675 = vmatprep.subr.mxu0 0.0
  %1676 = vmatpush2.msra.mxu0 0.0
  %1677 = vmatprep.subr.mxu0 0.0
  %1678 = vmatpush2.msra.mxu0 0.0
  %1679 = vmatprep.subr.mxu0 0.0
  %1680 = vmatpush2.msra.mxu0 0.0
  %1681 = vmatprep.subr.mxu0 0.0
  %1682 = vmatpush2.msra.mxu0 0.0
  %1683 = vmatprep.subr.mxu0 0.0
  %1684 = vmatpush2.msra.mxu0 0.0
  %1685 = vmatprep.subr.mxu0 0.0
  %1686 = vmatpush2.msra.mxu0 0.0
  %1687 = vmatprep.subr.mxu0 0.0
  %1688 = vmatpush2.msra.mxu0 0.0
  %1689 = vmatprep.subr.mxu0 0.0
  %1690 = vmatpush2.msra.mxu0 0.0
  %1691 = vmatprep.mubr.f32.mxu0 0.0
  %1692 = vmatmul.mubr.f32.gmra.mxu0 %v1577
  %v1693 = vpop.f32.mrf.mxu0
  %v1694 = vadd.f32 %v496, %v1693
  %v1695 = vpop.f32.mrf.mxu0
  %v1696 = vadd.f32 %v500, %v1695
  %1697 = vdwg.mxu0
  %1698 = vmatprep.subr.mxu0 0.0
  %1699 = vmatpush1.msra.mxu0 %v1626
  %1700 = vmatprep.subr.mxu0 0.0
  %1701 = vmatpush1.msra.mxu0 %v1623
  %1702 = vmatprep.subr.mxu0 0.0
  %1703 = vmatpush1.msra.mxu0 %v1620
  %1704 = vmatprep.subr.mxu0 0.0
  %1705 = vmatpush1.msra.mxu0 %v1617
  %1706 = vmatprep.subr.mxu0 0.0
  %1707 = vmatpush1.msra.mxu0 %v1614
  %1708 = vmatprep.subr.mxu0 0.0
  %1709 = vmatpush1.msra.mxu0 %v1611
  %1710 = vmatprep.subr.mxu0 0.0
  %1711 = vmatpush1.msra.mxu0 %v1608
  %1712 = vmatprep.subr.mxu0 0.0
  %1713 = vmatpush1.msra.mxu0 %v1605
  %1714 = vmatprep.subr.mxu0 0.0
  %1715 = vmatpush1.msra.mxu0 %v1602
  %1716 = vmatprep.subr.mxu0 0.0
  %1717 = vmatpush1.msra.mxu0 %v1599
  %1718 = vmatprep.subr.mxu0 0.0
  %1719 = vmatpush1.msra.mxu0 %v1596
  %1720 = vmatprep.subr.mxu0 0.0
  %1721 = vmatpush1.msra.mxu0 %v1593
  %1722 = vmatprep.subr.mxu0 0.0
  %1723 = vmatpush1.msra.mxu0 %v1590
  %1724 = vmatprep.subr.mxu0 0.0
  %1725 = vmatpush1.msra.mxu0 %v1587
  %1726 = vmatprep.subr.mxu0 0.0
  %1727 = vmatpush1.msra.mxu0 %v1584
  %1728 = vmatprep.subr.mxu0 0.0
  %1729 = vmatpush1.msra.mxu0 %v1581
  %1730 = vmatprep.subr.mxu0 0.0
  %1731 = vmatpush2.msra.mxu0 0.0
  %1732 = vmatprep.subr.mxu0 0.0
  %1733 = vmatpush2.msra.mxu0 0.0
  %1734 = vmatprep.subr.mxu0 0.0
  %1735 = vmatpush2.msra.mxu0 0.0
  %1736 = vmatprep.subr.mxu0 0.0
  %1737 = vmatpush2.msra.mxu0 0.0
  %1738 = vmatprep.subr.mxu0 0.0
  %1739 = vmatpush2.msra.mxu0 0.0
  %1740 = vmatprep.subr.mxu0 0.0
  %1741 = vmatpush2.msra.mxu0 0.0
  %1742 = vmatprep.subr.mxu0 0.0
  %1743 = vmatpush2.msra.mxu0 0.0
  %1744 = vmatprep.subr.mxu0 0.0
  %1745 = vmatpush2.msra.mxu0 0.0
  %1746 = vmatprep.subr.mxu0 0.0
  %1747 = vmatpush2.msra.mxu0 0.0
  %1748 = vmatprep.subr.mxu0 0.0
  %1749 = vmatpush2.msra.mxu0 0.0
  %1750 = vmatprep.subr.mxu0 0.0
  %1751 = vmatpush2.msra.mxu0 0.0
  %1752 = vmatprep.subr.mxu0 0.0
  %1753 = vmatpush2.msra.mxu0 0.0
  %1754 = vmatprep.subr.mxu0 0.0
  %1755 = vmatpush2.msra.mxu0 0.0
  %1756 = vmatprep.subr.mxu0 0.0
  %1757 = vmatpush2.msra.mxu0 0.0
  %1758 = vmatprep.subr.mxu0 0.0
  %1759 = vmatpush2.msra.mxu0 0.0
  %1760 = vmatprep.subr.mxu0 0.0
  %1761 = vmatpush2.msra.mxu0 0.0
  %1762 = vmatprep.mubr.f32.mxu0 0.0
  %1763 = vmatmul.mubr.f32.gmra.mxu0 %v1577
  %v1764 = vpop.f32.mrf.mxu0
  %v1765 = vadd.f32 %v504, %v1764
  %v1766 = vpop.f32.mrf.mxu0
  %1767 = vdwg.mxu0
  %v1768 = vld [vmem:[#allocation2 + $0x78] sm:$0xff]
  %v1769 = vld [vmem:[#allocation2 + $0x80] sm:$0xff]
  %v1770 = vld [vmem:[#allocation2 + $0x88] sm:$0xff]
  %v1771 = vadd.f32 %v1768, %v1694
  %v1772 = vxor.u32 %v1771, 2147483648
  %v1773 = vmul.f32 %v1772, 1.442695
  %v1774 = vpow.pop %v1773
  %v1775 = vadd.f32 %v1774, 1.0
  %v1776 = vrcp.pop %v1775
  %v1777 = vmul.f32 1.0, %v1776
  %v1778 = vadd.f32 %v1769, %v1696
  %v1779 = vxor.u32 %v1778, 2147483648
  %v1780 = vmul.f32 %v1779, 1.442695
  %v1781 = vpow.pop %v1780
  %v1782 = vadd.f32 %v1781, 1.0
  %v1783 = vrcp.pop %v1782
  %v1784 = vmul.f32 1.0, %v1783
  %v1785 = vmul.f32 %v1777, %v1765
  %v1786 = vadd.f32 %v1770, %v1785
  %v1787 = vtanh.pop %v1786
  %v1788 = vsub.f32 1.0, %v1784
  %v1789 = vmul.f32 %v1788, %v1787
  %v1790 = vmul.f32 %v1784, %v1577
  %v1791 = vadd.f32 %v1789, %v1790
  %1792 = vst [vmem:[%s7 + $0x28] sm:$0xff] %v1791
  %v1793 = vld [vmem:[%s5] sm:$0xff]
  %v1794 = vld [vmem:[%s5 + $0x8] sm:$0xff]
  %v1795 = vld [vmem:[%s5 + $0x10] sm:$0xff]
  %v1796 = vld [vmem:[%s5 + $0x18] sm:$0xff]
  %v1797 = vld [vmem:[%s5 + $0x20] sm:$0xff]
  %v1798 = vld [vmem:[%s5 + $0x28] sm:$0xff]
  %v1799 = vld [vmem:[%s5 + $0x30] sm:$0xff]
  %v1800 = vld [vmem:[%s5 + $0x38] sm:$0xff]
  %v1801 = vld [vmem:[%s5 + $0x40] sm:$0xff]
  %v1802 = vld [vmem:[%s5 + $0x48] sm:$0xff]
  %v1803 = vld [vmem:[%s5 + $0x50] sm:$0xff]
  %v1804 = vld [vmem:[%s5 + $0x58] sm:$0xff]
  %v1805 = vld [vmem:[%s5 + $0x60] sm:$0xff]
  %v1806 = vld [vmem:[%s5 + $0x68] sm:$0xff]
  %v1807 = vld [vmem:[%s5 + $0x70] sm:$0xff]
  %v1808 = vld [vmem:[%s5 + $0x78] sm:$0xff]
  %v1809 = vld [vmem:[%s5 + $0x80] sm:$0xff]
  %v1810 = vld [vmem:[%s5 + $0x88] sm:$0xff]
  %v1811 = vld [vmem:[%s5 + $0x90] sm:$0xff]
  %v1812 = vld [vmem:[%s5 + $0x98] sm:$0xff]
  %v1813 = vld [vmem:[%s5 + $0xa0] sm:$0xff]
  %v1814 = vld [vmem:[%s5 + $0xa8] sm:$0xff]
  %v1815 = vld [vmem:[%s5 + $0xb0] sm:$0xff]
  %v1816 = vld [vmem:[%s5 + $0xb8] sm:$0xff]
  %v1817 = vld [vmem:[%s5 + $0xc0] sm:$0xff]
  %v1818 = vld [vmem:[%s5 + $0xc8] sm:$0xff]
  %v1819 = vld [vmem:[%s5 + $0xd0] sm:$0xff]
  %v1820 = vld [vmem:[%s5 + $0xd8] sm:$0xff]
  %v1821 = vld [vmem:[%s5 + $0xe0] sm:$0xff]
  %v1822 = vld [vmem:[%s5 + $0xe8] sm:$0xff]
  %v1823 = vld [vmem:[%s5 + $0xf0] sm:$0xff]
  %v1824 = vld [vmem:[%s5 + $0xf8] sm:$0xff]
  %v1825 = vld [vmem:[%s5 + $0x100] sm:$0xff]
  %v1826 = vld [vmem:[%s5 + $0x108] sm:$0xff]
  %v1827 = vld [vmem:[%s5 + $0x110] sm:$0xff]
  %v1828 = vld [vmem:[%s5 + $0x118] sm:$0xff]
  %v1829 = vld [vmem:[%s5 + $0x120] sm:$0xff]
  %v1830 = vld [vmem:[%s5 + $0x128] sm:$0xff]
  %v1831 = vld [vmem:[%s5 + $0x130] sm:$0xff]
  %v1832 = vld [vmem:[%s5 + $0x138] sm:$0xff]
  %v1833 = vld [vmem:[%s5 + $0x140] sm:$0xff]
  %v1834 = vld [vmem:[%s5 + $0x148] sm:$0xff]
  %v1835 = vld [vmem:[%s5 + $0x150] sm:$0xff]
  %v1836 = vld [vmem:[%s5 + $0x158] sm:$0xff]
  %v1837 = vld [vmem:[%s5 + $0x160] sm:$0xff]
  %v1838 = vld [vmem:[%s5 + $0x168] sm:$0xff]
  %v1839 = vld [vmem:[%s5 + $0x170] sm:$0xff]
  %v1840 = vld [vmem:[%s5 + $0x178] sm:$0xff]
  %1841 = vmatprep.subr.mxu0 %v1839
  %1842 = vmatpush1.msra.mxu0 %v1838
  %1843 = vmatprep.subr.mxu0 %v1836
  %1844 = vmatpush1.msra.mxu0 %v1835
  %1845 = vmatprep.subr.mxu0 %v1833
  %1846 = vmatpush1.msra.mxu0 %v1832
  %1847 = vmatprep.subr.mxu0 %v1830
  %1848 = vmatpush1.msra.mxu0 %v1829
  %1849 = vmatprep.subr.mxu0 %v1827
  %1850 = vmatpush1.msra.mxu0 %v1826
  %1851 = vmatprep.subr.mxu0 %v1824
  %1852 = vmatpush1.msra.mxu0 %v1823
  %1853 = vmatprep.subr.mxu0 %v1821
  %1854 = vmatpush1.msra.mxu0 %v1820
  %1855 = vmatprep.subr.mxu0 %v1818
  %1856 = vmatpush1.msra.mxu0 %v1817
  %1857 = vmatprep.subr.mxu0 %v1815
  %1858 = vmatpush1.msra.mxu0 %v1814
  %1859 = vmatprep.subr.mxu0 %v1812
  %1860 = vmatpush1.msra.mxu0 %v1811
  %1861 = vmatprep.subr.mxu0 %v1809
  %1862 = vmatpush1.msra.mxu0 %v1808
  %1863 = vmatprep.subr.mxu0 %v1806
  %1864 = vmatpush1.msra.mxu0 %v1805
  %1865 = vmatprep.subr.mxu0 %v1803
  %1866 = vmatpush1.msra.mxu0 %v1802
  %1867 = vmatprep.subr.mxu0 %v1800
  %1868 = vmatpush1.msra.mxu0 %v1799
  %1869 = vmatprep.subr.mxu0 %v1797
  %1870 = vmatpush1.msra.mxu0 %v1796
  %1871 = vmatprep.subr.mxu0 %v1794
  %1872 = vmatpush1.msra.mxu0 %v1793
  %1873 = vmatprep.subr.mxu0 0.0
  %1874 = vmatpush2.msra.mxu0 0.0
  %1875 = vmatprep.subr.mxu0 0.0
  %1876 = vmatpush2.msra.mxu0 0.0
  %1877 = vmatprep.subr.mxu0 0.0
  %1878 = vmatpush2.msra.mxu0 0.0
  %1879 = vmatprep.subr.mxu0 0.0
  %1880 = vmatpush2.msra.mxu0 0.0
  %1881 = vmatprep.subr.mxu0 0.0
  %1882 = vmatpush2.msra.mxu0 0.0
  %1883 = vmatprep.subr.mxu0 0.0
  %1884 = vmatpush2.msra.mxu0 0.0
  %1885 = vmatprep.subr.mxu0 0.0
  %1886 = vmatpush2.msra.mxu0 0.0
  %1887 = vmatprep.subr.mxu0 0.0
  %1888 = vmatpush2.msra.mxu0 0.0
  %1889 = vmatprep.subr.mxu0 0.0
  %1890 = vmatpush2.msra.mxu0 0.0
  %1891 = vmatprep.subr.mxu0 0.0
  %1892 = vmatpush2.msra.mxu0 0.0
  %1893 = vmatprep.subr.mxu0 0.0
  %1894 = vmatpush2.msra.mxu0 0.0
  %1895 = vmatprep.subr.mxu0 0.0
  %1896 = vmatpush2.msra.mxu0 0.0
  %1897 = vmatprep.subr.mxu0 0.0
  %1898 = vmatpush2.msra.mxu0 0.0
  %1899 = vmatprep.subr.mxu0 0.0
  %1900 = vmatpush2.msra.mxu0 0.0
  %1901 = vmatprep.subr.mxu0 0.0
  %1902 = vmatpush2.msra.mxu0 0.0
  %1903 = vmatprep.subr.mxu0 0.0
  %1904 = vmatpush2.msra.mxu0 0.0
  %1905 = vmatprep.mubr.f32.mxu0 0.0
  %1906 = vmatmul.mubr.f32.gmra.mxu0 %v1791
  %v1907 = vpop.f32.mrf.mxu0
  %v1908 = vadd.f32 %v496, %v1907
  %v1909 = vpop.f32.mrf.mxu0
  %v1910 = vadd.f32 %v500, %v1909
  %1911 = vdwg.mxu0
  %1912 = vmatprep.subr.mxu0 0.0
  %1913 = vmatpush1.msra.mxu0 %v1840
  %1914 = vmatprep.subr.mxu0 0.0
  %1915 = vmatpush1.msra.mxu0 %v1837
  %1916 = vmatprep.subr.mxu0 0.0
  %1917 = vmatpush1.msra.mxu0 %v1834
  %1918 = vmatprep.subr.mxu0 0.0
  %1919 = vmatpush1.msra.mxu0 %v1831
  %1920 = vmatprep.subr.mxu0 0.0
  %1921 = vmatpush1.msra.mxu0 %v1828
  %1922 = vmatprep.subr.mxu0 0.0
  %1923 = vmatpush1.msra.mxu0 %v1825
  %1924 = vmatprep.subr.mxu0 0.0
  %1925 = vmatpush1.msra.mxu0 %v1822
  %1926 = vmatprep.subr.mxu0 0.0
  %1927 = vmatpush1.msra.mxu0 %v1819
  %1928 = vmatprep.subr.mxu0 0.0
  %1929 = vmatpush1.msra.mxu0 %v1816
  %1930 = vmatprep.subr.mxu0 0.0
  %1931 = vmatpush1.msra.mxu0 %v1813
  %1932 = vmatprep.subr.mxu0 0.0
  %1933 = vmatpush1.msra.mxu0 %v1810
  %1934 = vmatprep.subr.mxu0 0.0
  %1935 = vmatpush1.msra.mxu0 %v1807
  %1936 = vmatprep.subr.mxu0 0.0
  %1937 = vmatpush1.msra.mxu0 %v1804
  %1938 = vmatprep.subr.mxu0 0.0
  %1939 = vmatpush1.msra.mxu0 %v1801
  %1940 = vmatprep.subr.mxu0 0.0
  %1941 = vmatpush1.msra.mxu0 %v1798
  %1942 = vmatprep.subr.mxu0 0.0
  %1943 = vmatpush1.msra.mxu0 %v1795
  %1944 = vmatprep.subr.mxu0 0.0
  %1945 = vmatpush2.msra.mxu0 0.0
  %1946 = vmatprep.subr.mxu0 0.0
  %1947 = vmatpush2.msra.mxu0 0.0
  %1948 = vmatprep.subr.mxu0 0.0
  %1949 = vmatpush2.msra.mxu0 0.0
  %1950 = vmatprep.subr.mxu0 0.0
  %1951 = vmatpush2.msra.mxu0 0.0
  %1952 = vmatprep.subr.mxu0 0.0
  %1953 = vmatpush2.msra.mxu0 0.0
  %1954 = vmatprep.subr.mxu0 0.0
  %1955 = vmatpush2.msra.mxu0 0.0
  %1956 = vmatprep.subr.mxu0 0.0
  %1957 = vmatpush2.msra.mxu0 0.0
  %1958 = vmatprep.subr.mxu0 0.0
  %1959 = vmatpush2.msra.mxu0 0.0
  %1960 = vmatprep.subr.mxu0 0.0
  %1961 = vmatpush2.msra.mxu0 0.0
  %1962 = vmatprep.subr.mxu0 0.0
  %1963 = vmatpush2.msra.mxu0 0.0
  %1964 = vmatprep.subr.mxu0 0.0
  %1965 = vmatpush2.msra.mxu0 0.0
  %1966 = vmatprep.subr.mxu0 0.0
  %1967 = vmatpush2.msra.mxu0 0.0
  %1968 = vmatprep.subr.mxu0 0.0
  %1969 = vmatpush2.msra.mxu0 0.0
  %1970 = vmatprep.subr.mxu0 0.0
  %1971 = vmatpush2.msra.mxu0 0.0
  %1972 = vmatprep.subr.mxu0 0.0
  %1973 = vmatpush2.msra.mxu0 0.0
  %1974 = vmatprep.subr.mxu0 0.0
  %1975 = vmatpush2.msra.mxu0 0.0
  %1976 = vmatprep.mubr.f32.mxu0 0.0
  %1977 = vmatmul.mubr.f32.gmra.mxu0 %v1791
  %v1978 = vpop.f32.mrf.mxu0
  %v1979 = vadd.f32 %v504, %v1978
  %v1980 = vpop.f32.mrf.mxu0
  %1981 = vdwg.mxu0
  %v1982 = vld [vmem:[#allocation2 + $0x90] sm:$0xff]
  %v1983 = vld [vmem:[#allocation2 + $0x98] sm:$0xff]
  %v1984 = vld [vmem:[#allocation2 + $0xa0] sm:$0xff]
  %v1985 = vadd.f32 %v1982, %v1908
  %v1986 = vxor.u32 %v1985, 2147483648
  %v1987 = vmul.f32 %v1986, 1.442695
  %v1988 = vpow.pop %v1987
  %v1989 = vadd.f32 %v1988, 1.0
  %v1990 = vrcp.pop %v1989
  %v1991 = vmul.f32 1.0, %v1990
  %v1992 = vadd.f32 %v1983, %v1910
  %v1993 = vxor.u32 %v1992, 2147483648
  %v1994 = vmul.f32 %v1993, 1.442695
  %v1995 = vpow.pop %v1994
  %v1996 = vadd.f32 %v1995, 1.0
  %v1997 = vrcp.pop %v1996
  %v1998 = vmul.f32 1.0, %v1997
  %v1999 = vmul.f32 %v1991, %v1979
  %v2000 = vadd.f32 %v1984, %v1999
  %v2001 = vtanh.pop %v2000
  %v2002 = vsub.f32 1.0, %v1998
  %v2003 = vmul.f32 %v2002, %v2001
  %v2004 = vmul.f32 %v1998, %v1791
  %v2005 = vadd.f32 %v2003, %v2004
  %2006 = vst [vmem:[%s7 + $0x30] sm:$0xff] %v2005
  %v2007 = vld [vmem:[%s5] sm:$0xff]
  %v2008 = vld [vmem:[%s5 + $0x8] sm:$0xff]
  %v2009 = vld [vmem:[%s5 + $0x10] sm:$0xff]
  %v2010 = vld [vmem:[%s5 + $0x18] sm:$0xff]
  %v2011 = vld [vmem:[%s5 + $0x20] sm:$0xff]
  %v2012 = vld [vmem:[%s5 + $0x28] sm:$0xff]
  %v2013 = vld [vmem:[%s5 + $0x30] sm:$0xff]
  %v2014 = vld [vmem:[%s5 + $0x38] sm:$0xff]
  %v2015 = vld [vmem:[%s5 + $0x40] sm:$0xff]
  %v2016 = vld [vmem:[%s5 + $0x48] sm:$0xff]
  %v2017 = vld [vmem:[%s5 + $0x50] sm:$0xff]
  %v2018 = vld [vmem:[%s5 + $0x58] sm:$0xff]
  %v2019 = vld [vmem:[%s5 + $0x60] sm:$0xff]
  %v2020 = vld [vmem:[%s5 + $0x68] sm:$0xff]
  %v2021 = vld [vmem:[%s5 + $0x70] sm:$0xff]
  %v2022 = vld [vmem:[%s5 + $0x78] sm:$0xff]
  %v2023 = vld [vmem:[%s5 + $0x80] sm:$0xff]
  %v2024 = vld [vmem:[%s5 + $0x88] sm:$0xff]
  %v2025 = vld [vmem:[%s5 + $0x90] sm:$0xff]
  %v2026 = vld [vmem:[%s5 + $0x98] sm:$0xff]
  %v2027 = vld [vmem:[%s5 + $0xa0] sm:$0xff]
  %v2028 = vld [vmem:[%s5 + $0xa8] sm:$0xff]
  %v2029 = vld [vmem:[%s5 + $0xb0] sm:$0xff]
  %v2030 = vld [vmem:[%s5 + $0xb8] sm:$0xff]
  %v2031 = vld [vmem:[%s5 + $0xc0] sm:$0xff]
  %v2032 = vld [vmem:[%s5 + $0xc8] sm:$0xff]
  %v2033 = vld [vmem:[%s5 + $0xd0] sm:$0xff]
  %v2034 = vld [vmem:[%s5 + $0xd8] sm:$0xff]
  %v2035 = vld [vmem:[%s5 + $0xe0] sm:$0xff]
  %v2036 = vld [vmem:[%s5 + $0xe8] sm:$0xff]
  %v2037 = vld [vmem:[%s5 + $0xf0] sm:$0xff]
  %v2038 = vld [vmem:[%s5 + $0xf8] sm:$0xff]
  %v2039 = vld [vmem:[%s5 + $0x100] sm:$0xff]
  %v2040 = vld [vmem:[%s5 + $0x108] sm:$0xff]
  %v2041 = vld [vmem:[%s5 + $0x110] sm:$0xff]
  %v2042 = vld [vmem:[%s5 + $0x118] sm:$0xff]
  %v2043 = vld [vmem:[%s5 + $0x120] sm:$0xff]
  %v2044 = vld [vmem:[%s5 + $0x128] sm:$0xff]
  %v2045 = vld [vmem:[%s5 + $0x130] sm:$0xff]
  %v2046 = vld [vmem:[%s5 + $0x138] sm:$0xff]
  %v2047 = vld [vmem:[%s5 + $0x140] sm:$0xff]
  %v2048 = vld [vmem:[%s5 + $0x148] sm:$0xff]
  %v2049 = vld [vmem:[%s5 + $0x150] sm:$0xff]
  %v2050 = vld [vmem:[%s5 + $0x158] sm:$0xff]
  %v2051 = vld [vmem:[%s5 + $0x160] sm:$0xff]
  %v2052 = vld [vmem:[%s5 + $0x168] sm:$0xff]
  %v2053 = vld [vmem:[%s5 + $0x170] sm:$0xff]
  %v2054 = vld [vmem:[%s5 + $0x178] sm:$0xff]
  %2055 = vmatprep.subr.mxu0 %v2053
  %2056 = vmatpush1.msra.mxu0 %v2052
  %2057 = vmatprep.subr.mxu0 %v2050
  %2058 = vmatpush1.msra.mxu0 %v2049
  %2059 = vmatprep.subr.mxu0 %v2047
  %2060 = vmatpush1.msra.mxu0 %v2046
  %2061 = vmatprep.subr.mxu0 %v2044
  %2062 = vmatpush1.msra.mxu0 %v2043
  %2063 = vmatprep.subr.mxu0 %v2041
  %2064 = vmatpush1.msra.mxu0 %v2040
  %2065 = vmatprep.subr.mxu0 %v2038
  %2066 = vmatpush1.msra.mxu0 %v2037
  %2067 = vmatprep.subr.mxu0 %v2035
  %2068 = vmatpush1.msra.mxu0 %v2034
  %2069 = vmatprep.subr.mxu0 %v2032
  %2070 = vmatpush1.msra.mxu0 %v2031
  %2071 = vmatprep.subr.mxu0 %v2029
  %2072 = vmatpush1.msra.mxu0 %v2028
  %2073 = vmatprep.subr.mxu0 %v2026
  %2074 = vmatpush1.msra.mxu0 %v2025
  %2075 = vmatprep.subr.mxu0 %v2023
  %2076 = vmatpush1.msra.mxu0 %v2022
  %2077 = vmatprep.subr.mxu0 %v2020
  %2078 = vmatpush1.msra.mxu0 %v2019
  %2079 = vmatprep.subr.mxu0 %v2017
  %2080 = vmatpush1.msra.mxu0 %v2016
  %2081 = vmatprep.subr.mxu0 %v2014
  %2082 = vmatpush1.msra.mxu0 %v2013
  %2083 = vmatprep.subr.mxu0 %v2011
  %2084 = vmatpush1.msra.mxu0 %v2010
  %2085 = vmatprep.subr.mxu0 %v2008
  %2086 = vmatpush1.msra.mxu0 %v2007
  %2087 = vmatprep.subr.mxu0 0.0
  %2088 = vmatpush2.msra.mxu0 0.0
  %2089 = vmatprep.subr.mxu0 0.0
  %2090 = vmatpush2.msra.mxu0 0.0
  %2091 = vmatprep.subr.mxu0 0.0
  %2092 = vmatpush2.msra.mxu0 0.0
  %2093 = vmatprep.subr.mxu0 0.0
  %2094 = vmatpush2.msra.mxu0 0.0
  %2095 = vmatprep.subr.mxu0 0.0
  %2096 = vmatpush2.msra.mxu0 0.0
  %2097 = vmatprep.subr.mxu0 0.0
  %2098 = vmatpush2.msra.mxu0 0.0
  %2099 = vmatprep.subr.mxu0 0.0
  %2100 = vmatpush2.msra.mxu0 0.0
  %2101 = vmatprep.subr.mxu0 0.0
  %2102 = vmatpush2.msra.mxu0 0.0
  %2103 = vmatprep.subr.mxu0 0.0
  %2104 = vmatpush2.msra.mxu0 0.0
  %2105 = vmatprep.subr.mxu0 0.0
  %2106 = vmatpush2.msra.mxu0 0.0
  %2107 = vmatprep.subr.mxu0 0.0
  %2108 = vmatpush2.msra.mxu0 0.0
  %2109 = vmatprep.subr.mxu0 0.0
  %2110 = vmatpush2.msra.mxu0 0.0
  %2111 = vmatprep.subr.mxu0 0.0
  %2112 = vmatpush2.msra.mxu0 0.0
  %2113 = vmatprep.subr.mxu0 0.0
  %2114 = vmatpush2.msra.mxu0 0.0
  %2115 = vmatprep.subr.mxu0 0.0
  %2116 = vmatpush2.msra.mxu0 0.0
  %2117 = vmatprep.subr.mxu0 0.0
  %2118 = vmatpush2.msra.mxu0 0.0
  %2119 = vmatprep.mubr.f32.mxu0 0.0
  %2120 = vmatmul.mubr.f32.gmra.mxu0 %v2005
  %v2121 = vpop.f32.mrf.mxu0
  %v2122 = vadd.f32 %v496, %v2121
  %v2123 = vpop.f32.mrf.mxu0
  %v2124 = vadd.f32 %v500, %v2123
  %2125 = vdwg.mxu0
  %2126 = vmatprep.subr.mxu0 0.0
  %2127 = vmatpush1.msra.mxu0 %v2054
  %2128 = vmatprep.subr.mxu0 0.0
  %2129 = vmatpush1.msra.mxu0 %v2051
  %2130 = vmatprep.subr.mxu0 0.0
  %2131 = vmatpush1.msra.mxu0 %v2048
  %2132 = vmatprep.subr.mxu0 0.0
  %2133 = vmatpush1.msra.mxu0 %v2045
  %2134 = vmatprep.subr.mxu0 0.0
  %2135 = vmatpush1.msra.mxu0 %v2042
  %2136 = vmatprep.subr.mxu0 0.0
  %2137 = vmatpush1.msra.mxu0 %v2039
  %2138 = vmatprep.subr.mxu0 0.0
  %2139 = vmatpush1.msra.mxu0 %v2036
  %2140 = vmatprep.subr.mxu0 0.0
  %2141 = vmatpush1.msra.mxu0 %v2033
  %2142 = vmatprep.subr.mxu0 0.0
  %2143 = vmatpush1.msra.mxu0 %v2030
  %2144 = vmatprep.subr.mxu0 0.0
  %2145 = vmatpush1.msra.mxu0 %v2027
  %2146 = vmatprep.subr.mxu0 0.0
  %2147 = vmatpush1.msra.mxu0 %v2024
  %2148 = vmatprep.subr.mxu0 0.0
  %2149 = vmatpush1.msra.mxu0 %v2021
  %2150 = vmatprep.subr.mxu0 0.0
  %2151 = vmatpush1.msra.mxu0 %v2018
  %2152 = vmatprep.subr.mxu0 0.0
  %2153 = vmatpush1.msra.mxu0 %v2015
  %2154 = vmatprep.subr.mxu0 0.0
  %2155 = vmatpush1.msra.mxu0 %v2012
  %2156 = vmatprep.subr.mxu0 0.0
  %2157 = vmatpush1.msra.mxu0 %v2009
  %2158 = vmatprep.subr.mxu0 0.0
  %2159 = vmatpush2.msra.mxu0 0.0
  %2160 = vmatprep.subr.mxu0 0.0
  %2161 = vmatpush2.msra.mxu0 0.0
  %2162 = vmatprep.subr.mxu0 0.0
  %2163 = vmatpush2.msra.mxu0 0.0
  %2164 = vmatprep.subr.mxu0 0.0
  %2165 = vmatpush2.msra.mxu0 0.0
  %2166 = vmatprep.subr.mxu0 0.0
  %2167 = vmatpush2.msra.mxu0 0.0
  %2168 = vmatprep.subr.mxu0 0.0
  %2169 = vmatpush2.msra.mxu0 0.0
  %2170 = vmatprep.subr.mxu0 0.0
  %2171 = vmatpush2.msra.mxu0 0.0
  %2172 = vmatprep.subr.mxu0 0.0
  %2173 = vmatpush2.msra.mxu0 0.0
  %2174 = vmatprep.subr.mxu0 0.0
  %2175 = vmatpush2.msra.mxu0 0.0
  %2176 = vmatprep.subr.mxu0 0.0
  %2177 = vmatpush2.msra.mxu0 0.0
  %2178 = vmatprep.subr.mxu0 0.0
  %2179 = vmatpush2.msra.mxu0 0.0
  %2180 = vmatprep.subr.mxu0 0.0
  %2181 = vmatpush2.msra.mxu0 0.0
  %2182 = vmatprep.subr.mxu0 0.0
  %2183 = vmatpush2.msra.mxu0 0.0
  %2184 = vmatprep.subr.mxu0 0.0
  %2185 = vmatpush2.msra.mxu0 0.0
  %2186 = vmatprep.subr.mxu0 0.0
  %2187 = vmatpush2.msra.mxu0 0.0
  %2188 = vmatprep.subr.mxu0 0.0
  %2189 = vmatpush2.msra.mxu0 0.0
  %2190 = vmatprep.mubr.f32.mxu0 0.0
  %2191 = vmatmul.mubr.f32.gmra.mxu0 %v2005
  %v2192 = vpop.f32.mrf.mxu0
  %v2193 = vadd.f32 %v504, %v2192
  %v2194 = vpop.f32.mrf.mxu0
  %2195 = vdwg.mxu0
  %v2196 = vld [vmem:[#allocation2 + $0xa8] sm:$0xff]
  %v2197 = vld [vmem:[#allocation2 + $0xb0] sm:$0xff]
  %v2198 = vld [vmem:[#allocation2 + $0xb8] sm:$0xff]
  %v2199 = vadd.f32 %v2196, %v2122
  %v2200 = vxor.u32 %v2199, 2147483648
  %v2201 = vmul.f32 %v2200, 1.442695
  %v2202 = vpow.pop %v2201
  %v2203 = vadd.f32 %v2202, 1.0
  %v2204 = vrcp.pop %v2203
  %v2205 = vmul.f32 1.0, %v2204
  %v2206 = vadd.f32 %v2197, %v2124
  %v2207 = vxor.u32 %v2206, 2147483648
  %v2208 = vmul.f32 %v2207, 1.442695
  %v2209 = vpow.pop %v2208
  %v2210 = vadd.f32 %v2209, 1.0
  %v2211 = vrcp.pop %v2210
  %v2212 = vmul.f32 1.0, %v2211
  %v2213 = vmul.f32 %v2205, %v2193
  %v2214 = vadd.f32 %v2198, %v2213
  %v2215 = vtanh.pop %v2214
  %v2216 = vsub.f32 1.0, %v2212
  %v2217 = vmul.f32 %v2216, %v2215
  %v2218 = vmul.f32 %v2212, %v2005
  %v2219 = vadd.f32 %v2217, %v2218
  %2220 = vst [vmem:[%s7 + $0x38] sm:$0xff] %v2219
  %2221 = vst [vmem:[#allocation3] sm:$0xff] %v2219
  // Predicated region
  $region34: #{encoder_rnn_forward.1} parent=0 // pred_check
    _
  $region35: #{encoder_rnn_forward.1} parent=0 // pred_check_branch
    %2223 = sbr.rel (0) target = $region37
  $region36: #{encoder_rnn_forward.1} parent=0 // pred_region
    _
  $region37: #{encoder_rnn_forward.1} parent=0 // pred_fallthru
    _
  // Predicated region
  $region38: #{encoder_rnn_forward.1} parent=0 // pred_check
    _
  $region39: #{encoder_rnn_forward.1} parent=0 // pred_check_branch
    %2225 = sbr.rel (0) target = $region41
  $region40: #{encoder_rnn_forward.1} parent=0 // pred_region
    _
  $region41: #{encoder_rnn_forward.1} parent=0 // pred_fallthru
    _

</llo_original>
